<compile_context>
chip_gen: v6e
topology: v6e:2x2x1
jax: 0.10.0
libtpu: 0.0.40
codegen_flags: <defaults>
</compile_context>

<pallas_src>
import functools

import jax
import jax.numpy as jnp
from jax.experimental import pallas as pl
from jax.experimental.pallas import tpu as pltpu


def _round_up(x, m):
    return (x + m - 1) // m * m


def _pad2d(x, rows, cols):
    r, c = x.shape
    if r == rows and c == cols:
        return x
    return jnp.pad(x, ((0, rows - r), (0, cols - c)))


# ----------------------------------------------------------------------------
# Pallas kernel 1: out = act(A @ W + b)   (conv layers via im2col matmul)
# ----------------------------------------------------------------------------
def _matmul_act_kernel(a_ref, w_ref, b_ref, o_ref, *, activation):
    a = a_ref[...]
    if a.dtype != w_ref.dtype:
        # uint8 patches -> f32 -> bf16 (exact for 0..255), hits bf16 MXU path.
        a = a.astype(jnp.float32).astype(w_ref.dtype)
    acc = jnp.dot(a, w_ref[...], preferred_element_type=jnp.float32)
    acc = acc + b_ref[...]                       # (1, N) broadcast over rows
    if activation == "relu":
        acc = jnp.maximum(acc, 0.0)
    o_ref[...] = acc.astype(o_ref.dtype)


def fused_matmul(a, w_bf16, b_f32, *, activation="none",
                 out_dtype=jnp.float32, tm_max=512):
    """a: (M, K) uint8/bf16, w: (K, N) bf16, b: (N,) f32 -> (M, N) out_dtype."""
    M, K = a.shape
    K2, N = w_bf16.shape
    assert K == K2, (K, K2)
    k_pad = _round_up(K, 128)
    n_pad = _round_up(N, 128)
    tm = min(tm_max, _round_up(max(M, 1), 128))   # 128-aligned, VMEM-safe (v7x)
    m_pad = _round_up(M, tm)

    a_p = _pad2d(a, m_pad, k_pad)
    w_p = _pad2d(w_bf16, k_pad, n_pad)
    b_p = jnp.pad(b_f32.astype(jnp.float32), (0, n_pad - N)).reshape(1, n_pad)

    kernel = functools.partial(_matmul_act_kernel, activation=activation)
    out = pl.pallas_call(
        kernel,
        out_shape=jax.ShapeDtypeStruct((m_pad, n_pad), out_dtype),
        grid=(m_pad // tm,),
        in_specs=[
            pl.BlockSpec((tm, k_pad), lambda i: (i, 0)),
            pl.BlockSpec((k_pad, n_pad), lambda i: (0, 0)),   # weights resident
            pl.BlockSpec((1, n_pad), lambda i: (0, 0)),
        ],
        out_specs=pl.BlockSpec((tm, n_pad), lambda i: (i, 0)),
        compiler_params=pltpu.CompilerParams(
            dimension_semantics=("parallel",)),
    )(a_p, w_p, b_p)
    return out[:M, :N]


# ----------------------------------------------------------------------------
# Pallas kernel 2: mu = out_scale * tanh( relu(A @ W1 + b1) @ W2 + b2 )
# (fc1 + fc2 fused; hidden activation stays in VMEM / vregs)
# ----------------------------------------------------------------------------
def _mlp_kernel(a_ref, w1_ref, b1_ref, w2_ref, b2_ref, o_ref, *, out_scale):
    a = a_ref[...]
    if a.dtype != w1_ref.dtype:
        a = a.astype(jnp.float32).astype(w1_ref.dtype)
    h = jnp.dot(a, w1_ref[...], preferred_element_type=jnp.float32)
    h = jnp.maximum(h + b1_ref[...], 0.0)
    z = jnp.dot(h.astype(w2_ref.dtype), w2_ref[...],
                preferred_element_type=jnp.float32)
    o_ref[...] = (out_scale * jnp.tanh(z + b2_ref[...])).astype(o_ref.dtype)


def fused_mlp(a, w1, b1, w2, b2, *, out_scale, out_dtype=jnp.float32,
              tm_max=512):
    M, K1 = a.shape
    K1b, H = w1.shape
    Hb, N = w2.shape
    assert K1 == K1b and H == Hb
    k_pad = _round_up(K1, 128)
    h_pad = _round_up(H, 128)
    n_pad = _round_up(N, 128)
    tm = min(tm_max, _round_up(max(M, 1), 128))
    m_pad = _round_up(M, tm)

    a_p = _pad2d(a, m_pad, k_pad)
    w1_p = _pad2d(w1, k_pad, h_pad)
    b1_p = jnp.pad(b1.astype(jnp.float32), (0, h_pad - H)).reshape(1, h_pad)
    w2_p = _pad2d(w2, h_pad, n_pad)
    b2_p = jnp.pad(b2.astype(jnp.float32), (0, n_pad - N)).reshape(1, n_pad)

    kernel = functools.partial(_mlp_kernel, out_scale=out_scale)
    out = pl.pallas_call(
        kernel,
        out_shape=jax.ShapeDtypeStruct((m_pad, n_pad), out_dtype),
        grid=(m_pad // tm,),
        in_specs=[
            pl.BlockSpec((tm, k_pad), lambda i: (i, 0)),
            pl.BlockSpec((k_pad, h_pad), lambda i: (0, 0)),
            pl.BlockSpec((1, h_pad), lambda i: (0, 0)),
            pl.BlockSpec((h_pad, n_pad), lambda i: (0, 0)),
            pl.BlockSpec((1, n_pad), lambda i: (0, 0)),
        ],
        out_specs=pl.BlockSpec((tm, n_pad), lambda i: (i, 0)),
        compiler_params=pltpu.CompilerParams(
            dimension_semantics=("parallel",)),
    )(a_p, w1_p, b1_p, w2_p, b2_p)
    return out[:M, :N]


# ----------------------------------------------------------------------------
# Glue: im2col patch extraction (slices/reshapes in plain JAX; dtype preserved
# so conv1's patches stay uint8 until inside the kernel)
# ----------------------------------------------------------------------------
def im2col(x_nhwc, kh, kw, sh, sw):
    """(N, H, W, C) -> (N*Ho*Wo, C*kh*kw) matching PyTorch's (Cin, kh, kw)
    conv-weight flatten order."""
    N, H, W, C = x_nhwc.shape
    Ho = (H - kh) // sh + 1
    Wo = (W - kw) // sw + 1
    cols = []
    for i in range(kh):
        for j in range(kw):
            cols.append(x_nhwc[:, i:i + sh * Ho:sh, j:j + sw * Wo:sw, :])
    p = jnp.stack(cols, axis=3)                       # (N, Ho, Wo, kh*kw, C)
    p = p.reshape(N, Ho, Wo, kh, kw, C)
    p = jnp.transpose(p, (0, 1, 2, 5, 3, 4))          # (N, Ho, Wo, C, kh, kw)
    return p.reshape(N * Ho * Wo, C * kh * kw), Ho, Wo


# ----------------------------------------------------------------------------
# Model: Conv(8x8 s4) -> ReLU -> Conv(4x4 s2) -> ReLU -> FC(256) -> ReLU
#        -> FC(action_size) -> output_max * tanh
# ----------------------------------------------------------------------------
class MuConv2dModelPallas:
    def __init__(self, image_shape, action_size, fc_sizes=256, output_max=1.0,
                 key=None):
        c, h, w = image_shape
        self.channels = (16, 32)
        self.output_max = float(output_max)

        h1 = (h - 8) // 4 + 1
        w1 = (w - 8) // 4 + 1
        h2 = (h1 - 4) // 2 + 1
        w2 = (w1 - 4) // 2 + 1
        assert h2 >= 1 and w2 >= 1, "spatial size too small for default convs"
        self._conv_dims = (h1, w1, h2, w2)
        conv_out_size = self.channels[1] * h2 * w2

        if key is None:
            key = jax.random.PRNGKey(42)
        k = jax.random.split(key, 8)
        scale = 0.05
        # PyTorch conv weight layout: (Cout, Cin, kh, kw)
        conv1_w = scale * jax.random.normal(k[0], (16, c, 8, 8), jnp.float32)
        conv1_b = scale * jax.random.normal(k[1], (16,), jnp.float32)
        conv2_w = scale * jax.random.normal(k[2], (32, 16, 4, 4), jnp.float32)
        conv2_b = scale * jax.random.normal(k[3], (32,), jnp.float32)
        fc1_w = scale * jax.random.normal(k[4], (conv_out_size, fc_sizes),
                                          jnp.float32)
        fc1_b = scale * jax.random.normal(k[5], (fc_sizes,), jnp.float32)
        fc2_w = scale * jax.random.normal(k[6], (fc_sizes, action_size),
                                          jnp.float32)
        fc2_b = scale * jax.random.normal(k[7], (action_size,), jnp.float32)

        # Fold img_norm = 2*img/255 - 1 into conv1 (elementwise, commutes with
        # im2col):  W' = W*2/255,  b' = b - sum_{Cin,kh,kw} W
        conv1_w_eff = conv1_w * (2.0 / 255.0)
        conv1_b_eff = conv1_b - conv1_w.sum(axis=(1, 2, 3))

        # im2col matmul weights, K rows in (Cin, kh, kw) order, bf16 for MXU.
        self.conv1_wm = conv1_w_eff.reshape(16, -1).T.astype(jnp.bfloat16)
        self.conv1_bv = conv1_b_eff.astype(jnp.float32)
        self.conv2_wm = conv2_w.reshape(32, -1).T.astype(jnp.bfloat16)
        self.conv2_bv = conv2_b.astype(jnp.float32)

        # Permute fc1 rows from NCHW-flatten order to NHWC-flatten order once
        # at init so the conv2 output needs no transpose before the MLP.
        fc1_w_nhwc = (fc1_w.reshape(self.channels[1], h2, w2, fc_sizes)
                      .transpose(1, 2, 0, 3)
                      .reshape(conv_out_size, fc_sizes))
        self.fc1_wm = fc1_w_nhwc.astype(jnp.bfloat16)
        self.fc1_bv = fc1_b.astype(jnp.float32)
        self.fc2_wm = fc2_w.astype(jnp.bfloat16)
        self.fc2_bv = fc2_b.astype(jnp.float32)

    def __call__(self, observation, prev_action=None, prev_reward=None):
        # observation: (B, C, H, W) uint8; prev_action/prev_reward unused (as
        # in the torch module).  Leading T*B already merged (lead_dim handling
        # is wrapper-level glue).
        n = observation.shape[0]
        h1, w1, h2, w2 = self._conv_dims
        x = jnp.transpose(observation, (0, 2, 3, 1))      # NCHW -> NHWC, uint8

        # conv1 (+ folded normalization) + ReLU; patches stay uint8 until VMEM.
        p1, _, _ = im2col(x, 8, 8, 4, 4)
        y1 = fused_matmul(p1, self.conv1_wm, self.conv1_bv,
                          activation="relu", out_dtype=jnp.bfloat16)
        y1 = y1.reshape(n, h1, w1, self.channels[0])

        # conv2 + ReLU
        p2, _, _ = im2col(y1, 4, 4, 2, 2)
        y2 = fused_matmul(p2, self.conv2_wm, self.conv2_bv,
                          activation="relu", out_dtype=jnp.bfloat16)

        # y2 rows are already in (n, h2, w2) order, cols are channels, so a
        # plain reshape gives the NHWC flatten that fc1_wm expects.
        flat = y2.reshape(n, h2 * w2 * self.channels[1])

        # fc1 + ReLU + fc2 + output_max*tanh, fused into one kernel.
        mu = fused_mlp(flat, self.fc1_wm, self.fc1_bv,
                       self.fc2_wm, self.fc2_bv,
                       out_scale=self.output_max, out_dtype=jnp.float32)
        return mu


if __name__ == "__main__":
    key = jax.random.PRNGKey(0)
    k_obs, k_model = jax.random.split(key)

    B, C, H, W = 2, 4, 32, 32      # spatial=32 needed by the 8/4-stride convs
    action_size = 6

    observation = jax.random.randint(k_obs, (B, C, H, W), 0, 256,
                                     dtype=jnp.int32).astype(jnp.uint8)
    prev_action = jnp.zeros((B, action_size), jnp.float32)   # unused, as torch
    prev_reward = jnp.zeros((B,), jnp.float32)               # unused, as torch

    model = MuConv2dModelPallas((C, H, W), action_size, fc_sizes=256,
                                output_max=1.0, key=k_model)

    fwd = jax.jit(lambda obs: model(obs, prev_action, prev_reward))
    mu = jax.block_until_ready(fwd(observation))

    assert mu.shape == (B, action_size)
    assert bool(jnp.all(jnp.abs(mu) <= 1.0))
    assert bool(jnp.all(jnp.isfinite(mu)))
    print("KERNEL_OK")
</pallas_src>

<mosaic_0001>
module attributes {stable_mosaic.version = 11 : i64} {
  func.func @_matmul_act_kernel(%arg0: i32, %arg1: memref<128x256xi8, #tpu.memory_space<vmem>>, %arg2: memref<256x128xbf16, #tpu.memory_space<vmem>>, %arg3: memref<1x128xf32, #tpu.memory_space<vmem>>, %arg4: memref<128x128xbf16, #tpu.memory_space<vmem>>) attributes {dimension_semantics = [#tpu.dimension_semantics<parallel>], iteration_bounds = array<i64: 1>, scalar_prefetch = 0 : i64, scratch_operands = 0 : i64, tpu.core_type = #tpu.core_type<tc>, window_params = [{transform_indices = @transform_0, window_bounds = array<i64: 128, 256>}, {pipeline_mode = #tpu.pipeline_mode<synchronous>, transform_indices = @transform_1, window_bounds = array<i64: 256, 128>}, {pipeline_mode = #tpu.pipeline_mode<synchronous>, transform_indices = @transform_2, window_bounds = array<i64: 1, 128>}, {transform_indices = @transform_3, window_bounds = array<i64: 128, 128>}]} {
    %c0 = arith.constant 0 : index
    %c0_0 = arith.constant 0 : index
    %0 = vector.load %arg1[%c0, %c0_0] : memref<128x256xi8, #tpu.memory_space<vmem>>, vector<128x256xi8>
    %1 = arith.uitofp %0 : vector<128x256xi8> to vector<128x256xf32>
    %2 = arith.truncf %1 : vector<128x256xf32> to vector<128x256xbf16>
    %c0_1 = arith.constant 0 : index
    %c0_2 = arith.constant 0 : index
    %3 = vector.load %arg2[%c0_1, %c0_2] : memref<256x128xbf16, #tpu.memory_space<vmem>>, vector<256x128xbf16>
    %cst = arith.constant dense<0.000000e+00> : vector<128x128xf32>
    %4 = tpu.matmul %2, %3, %cst {dimension_numbers = #tpu.dot_dimension_numbers<[1], [0], [0], [1], [0, 0, 1, 1], [], []>} : vector<128x256xbf16>, vector<256x128xbf16>, vector<128x128xf32> -> vector<128x128xf32>
    %c0_3 = arith.constant 0 : index
    %c0_4 = arith.constant 0 : index
    %5 = vector.load %arg3[%c0_3, %c0_4] : memref<1x128xf32, #tpu.memory_space<vmem>>, vector<1x128xf32>
    %6 = vector.broadcast %5 : vector<1x128xf32> to vector<128x128xf32>
    %7 = arith.addf %4, %6 : vector<128x128xf32>
    %cst_5 = arith.constant 0.000000e+00 : f32
    %8 = vector.broadcast %cst_5 : f32 to vector<128x128xf32>
    %9 = arith.maximumf %7, %8 : vector<128x128xf32>
    %10 = arith.truncf %9 : vector<128x128xf32> to vector<128x128xbf16>
    %c0_6 = arith.constant 0 : index
    %c0_7 = arith.constant 0 : index
    %11 = vector.load %arg4[%c0_6, %c0_7] : memref<128x128xbf16, #tpu.memory_space<vmem>>, vector<128x128xbf16>
    tpu.vector_store %arg4[%c0_6, %c0_7], %10 {strides = array<i32>} : memref<128x128xbf16, #tpu.memory_space<vmem>>, vector<128x128xbf16>,
    return
  }
  func.func @transform_0(%arg0: i32) -> (i32, i32) {
    %c0_i32 = arith.constant 0 : i32
    %c0_i32_0 = arith.constant 0 : i32
    return %arg0, %c0_i32 : i32, i32
  }
  func.func @transform_1(%arg0: i32) -> (i32, i32) {
    %c0_i32 = arith.constant 0 : i32
    %c0_i32_0 = arith.constant 0 : i32
    %c0_i32_1 = arith.constant 0 : i32
    return %c0_i32, %c0_i32_0 : i32, i32
  }
  func.func @transform_2(%arg0: i32) -> (i32, i32) {
    %c0_i32 = arith.constant 0 : i32
    %c0_i32_0 = arith.constant 0 : i32
    %c0_i32_1 = arith.constant 0 : i32
    return %c0_i32, %c0_i32_0 : i32, i32
  }
  func.func @transform_3(%arg0: i32) -> (i32, i32) {
    %c0_i32 = arith.constant 0 : i32
    %c0_i32_0 = arith.constant 0 : i32
    return %arg0, %c0_i32 : i32, i32
  }
}

module attributes {stable_mosaic.version = 11 : i64} {
  func.func @_matmul_act_kernel(%arg0: i32, %arg1: memref<128x256xbf16, #tpu.memory_space<vmem>>, %arg2: memref<256x128xbf16, #tpu.memory_space<vmem>>, %arg3: memref<1x128xf32, #tpu.memory_space<vmem>>, %arg4: memref<128x128xbf16, #tpu.memory_space<vmem>>) attributes {dimension_semantics = [#tpu.dimension_semantics<parallel>], iteration_bounds = array<i64: 1>, scalar_prefetch = 0 : i64, scratch_operands = 0 : i64, tpu.core_type = #tpu.core_type<tc>, window_params = [{transform_indices = @transform_0, window_bounds = array<i64: 128, 256>}, {pipeline_mode = #tpu.pipeline_mode<synchronous>, transform_indices = @transform_1, window_bounds = array<i64: 256, 128>}, {pipeline_mode = #tpu.pipeline_mode<synchronous>, transform_indices = @transform_2, window_bounds = array<i64: 1, 128>}, {transform_indices = @transform_3, window_bounds = array<i64: 128, 128>}]} {
    %c0 = arith.constant 0 : index
    %c0_0 = arith.constant 0 : index
    %0 = vector.load %arg1[%c0, %c0_0] : memref<128x256xbf16, #tpu.memory_space<vmem>>, vector<128x256xbf16>
    %c0_1 = arith.constant 0 : index
    %c0_2 = arith.constant 0 : index
    %1 = vector.load %arg2[%c0_1, %c0_2] : memref<256x128xbf16, #tpu.memory_space<vmem>>, vector<256x128xbf16>
    %cst = arith.constant dense<0.000000e+00> : vector<128x128xf32>
    %2 = tpu.matmul %0, %1, %cst {dimension_numbers = #tpu.dot_dimension_numbers<[1], [0], [0], [1], [0, 0, 1, 1], [], []>} : vector<128x256xbf16>, vector<256x128xbf16>, vector<128x128xf32> -> vector<128x128xf32>
    %c0_3 = arith.constant 0 : index
    %c0_4 = arith.constant 0 : index
    %3 = vector.load %arg3[%c0_3, %c0_4] : memref<1x128xf32, #tpu.memory_space<vmem>>, vector<1x128xf32>
    %4 = vector.broadcast %3 : vector<1x128xf32> to vector<128x128xf32>
    %5 = arith.addf %2, %4 : vector<128x128xf32>
    %cst_5 = arith.constant 0.000000e+00 : f32
    %6 = vector.broadcast %cst_5 : f32 to vector<128x128xf32>
    %7 = arith.maximumf %5, %6 : vector<128x128xf32>
    %8 = arith.truncf %7 : vector<128x128xf32> to vector<128x128xbf16>
    %c0_6 = arith.constant 0 : index
    %c0_7 = arith.constant 0 : index
    %9 = vector.load %arg4[%c0_6, %c0_7] : memref<128x128xbf16, #tpu.memory_space<vmem>>, vector<128x128xbf16>
    tpu.vector_store %arg4[%c0_6, %c0_7], %8 {strides = array<i32>} : memref<128x128xbf16, #tpu.memory_space<vmem>>, vector<128x128xbf16>,
    return
  }
  func.func @transform_0(%arg0: i32) -> (i32, i32) {
    %c0_i32 = arith.constant 0 : i32
    %c0_i32_0 = arith.constant 0 : i32
    return %arg0, %c0_i32 : i32, i32
  }
  func.func @transform_1(%arg0: i32) -> (i32, i32) {
    %c0_i32 = arith.constant 0 : i32
    %c0_i32_0 = arith.constant 0 : i32
    %c0_i32_1 = arith.constant 0 : i32
    return %c0_i32, %c0_i32_0 : i32, i32
  }
  func.func @transform_2(%arg0: i32) -> (i32, i32) {
    %c0_i32 = arith.constant 0 : i32
    %c0_i32_0 = arith.constant 0 : i32
    %c0_i32_1 = arith.constant 0 : i32
    return %c0_i32, %c0_i32_0 : i32, i32
  }
  func.func @transform_3(%arg0: i32) -> (i32, i32) {
    %c0_i32 = arith.constant 0 : i32
    %c0_i32_0 = arith.constant 0 : i32
    return %arg0, %c0_i32 : i32, i32
  }
}

module attributes {stable_mosaic.version = 11 : i64} {
  func.func @_mlp_kernel(%arg0: i32, %arg1: memref<128x128xbf16, #tpu.memory_space<vmem>>, %arg2: memref<128x256xbf16, #tpu.memory_space<vmem>>, %arg3: memref<1x256xf32, #tpu.memory_space<vmem>>, %arg4: memref<256x128xbf16, #tpu.memory_space<vmem>>, %arg5: memref<1x128xf32, #tpu.memory_space<vmem>>, %arg6: memref<128x128xf32, #tpu.memory_space<vmem>>) attributes {dimension_semantics = [#tpu.dimension_semantics<parallel>], iteration_bounds = array<i64: 1>, scalar_prefetch = 0 : i64, scratch_operands = 0 : i64, tpu.core_type = #tpu.core_type<tc>, window_params = [{transform_indices = @transform_0, window_bounds = array<i64: 128, 128>}, {pipeline_mode = #tpu.pipeline_mode<synchronous>, transform_indices = @transform_1, window_bounds = array<i64: 128, 256>}, {pipeline_mode = #tpu.pipeline_mode<synchronous>, transform_indices = @transform_2, window_bounds = array<i64: 1, 256>}, {pipeline_mode = #tpu.pipeline_mode<synchronous>, transform_indices = @transform_3, window_bounds = array<i64: 256, 128>}, {pipeline_mode = #tpu.pipeline_mode<synchronous>, transform_indices = @transform_4, window_bounds = array<i64: 1, 128>}, {transform_indices = @transform_5, window_bounds = array<i64: 128, 128>}]} {
    %c0 = arith.constant 0 : index
    %c0_0 = arith.constant 0 : index
    %0 = vector.load %arg1[%c0, %c0_0] : memref<128x128xbf16, #tpu.memory_space<vmem>>, vector<128x128xbf16>
    %c0_1 = arith.constant 0 : index
    %c0_2 = arith.constant 0 : index
    %1 = vector.load %arg2[%c0_1, %c0_2] : memref<128x256xbf16, #tpu.memory_space<vmem>>, vector<128x256xbf16>
    %cst = arith.constant dense<0.000000e+00> : vector<128x256xf32>
    %2 = tpu.matmul %0, %1, %cst {dimension_numbers = #tpu.dot_dimension_numbers<[1], [0], [0], [1], [0, 0, 1, 1], [], []>} : vector<128x128xbf16>, vector<128x256xbf16>, vector<128x256xf32> -> vector<128x256xf32>
    %c0_3 = arith.constant 0 : index
    %c0_4 = arith.constant 0 : index
    %3 = vector.load %arg3[%c0_3, %c0_4] : memref<1x256xf32, #tpu.memory_space<vmem>>, vector<1x256xf32>
    %4 = vector.broadcast %3 : vector<1x256xf32> to vector<128x256xf32>
    %5 = arith.addf %2, %4 : vector<128x256xf32>
    %cst_5 = arith.constant 0.000000e+00 : f32
    %6 = vector.broadcast %cst_5 : f32 to vector<128x256xf32>
    %7 = arith.maximumf %5, %6 : vector<128x256xf32>
    %8 = arith.truncf %7 : vector<128x256xf32> to vector<128x256xbf16>
    %c0_6 = arith.constant 0 : index
    %c0_7 = arith.constant 0 : index
    %9 = vector.load %arg4[%c0_6, %c0_7] : memref<256x128xbf16, #tpu.memory_space<vmem>>, vector<256x128xbf16>
    %cst_8 = arith.constant dense<0.000000e+00> : vector<128x128xf32>
    %10 = tpu.matmul %8, %9, %cst_8 {dimension_numbers = #tpu.dot_dimension_numbers<[1], [0], [0], [1], [0, 0, 1, 1], [], []>} : vector<128x256xbf16>, vector<256x128xbf16>, vector<128x128xf32> -> vector<128x128xf32>
    %c0_9 = arith.constant 0 : index
    %c0_10 = arith.constant 0 : index
    %11 = vector.load %arg5[%c0_9, %c0_10] : memref<1x128xf32, #tpu.memory_space<vmem>>, vector<1x128xf32>
    %12 = vector.broadcast %11 : vector<1x128xf32> to vector<128x128xf32>
    %13 = arith.addf %10, %12 : vector<128x128xf32>
    %14 = math.tanh %13 : vector<128x128xf32>
    %cst_11 = arith.constant 1.000000e+00 : f32
    %15 = vector.broadcast %cst_11 : f32 to vector<128x128xf32>
    %16 = arith.mulf %15, %14 : vector<128x128xf32>
    %c0_12 = arith.constant 0 : index
    %c0_13 = arith.constant 0 : index
    %17 = vector.load %arg6[%c0_12, %c0_13] : memref<128x128xf32, #tpu.memory_space<vmem>>, vector<128x128xf32>
    tpu.vector_store %arg6[%c0_12, %c0_13], %16 {strides = array<i32>} : memref<128x128xf32, #tpu.memory_space<vmem>>, vector<128x128xf32>,
    return
  }
  func.func @transform_0(%arg0: i32) -> (i32, i32) {
    %c0_i32 = arith.constant 0 : i32
    %c0_i32_0 = arith.constant 0 : i32
    return %arg0, %c0_i32 : i32, i32
  }
  func.func @transform_1(%arg0: i32) -> (i32, i32) {
    %c0_i32 = arith.constant 0 : i32
    %c0_i32_0 = arith.constant 0 : i32
    %c0_i32_1 = arith.constant 0 : i32
    return %c0_i32, %c0_i32_0 : i32, i32
  }
  func.func @transform_2(%arg0: i32) -> (i32, i32) {
    %c0_i32 = arith.constant 0 : i32
    %c0_i32_0 = arith.constant 0 : i32
    %c0_i32_1 = arith.constant 0 : i32
    return %c0_i32, %c0_i32_0 : i32, i32
  }
  func.func @transform_3(%arg0: i32) -> (i32, i32) {
    %c0_i32 = arith.constant 0 : i32
    %c0_i32_0 = arith.constant 0 : i32
    %c0_i32_1 = arith.constant 0 : i32
    return %c0_i32, %c0_i32_0 : i32, i32
  }
  func.func @transform_4(%arg0: i32) -> (i32, i32) {
    %c0_i32 = arith.constant 0 : i32
    %c0_i32_0 = arith.constant 0 : i32
    %c0_i32_1 = arith.constant 0 : i32
    return %c0_i32, %c0_i32_0 : i32, i32
  }
  func.func @transform_5(%arg0: i32) -> (i32, i32) {
    %c0_i32 = arith.constant 0 : i32
    %c0_i32_0 = arith.constant 0 : i32
    return %arg0, %c0_i32 : i32, i32
  }
}

</mosaic_0001>

<llo_original>
// kernel: _lambda_.3
$region0: #{_lambda_.3}
  #allocation0 [shape = 'u32[]', space=smem, size = 0x4, offset = 0x4, fixed_abs, tag = 'smem constant byte address 0x4 - core index']
  #allocation1 [shape = 'u32[144,128]{1,0:T(1,128)}', space=vmem, size = 0x12000, scoped, tag = 'internal scratch']
  %s0 = inlined_call_operand.vmem [shape: u8[128,256], index: 0, kind: input, shape index: {}]
  %s1 = inlined_call_operand.vmem [shape: bf16[256,128], index: 1, kind: input, shape index: {}]
  %s2 = inlined_call_operand.vmem [shape: f32[1,128], index: 2, kind: input, shape index: {}]
  %s3 = inlined_call_operand.vmem [shape: bf16[128,128], index: 3, kind: output, shape index: {}]
  %s4 = sld [smem:[#allocation0]]
  $region22: #{_lambda_.3} parent=0
    _
  %s6 = ssub.s32 1, %s4
  %s7 = scalar_select 0, %s6, %s4
  // Predicated region
  $region2: #{_lambda_.3} parent=0 // pred_check
    _
  $region3: #{_lambda_.3} parent=0 // pred_check_branch
    %9 = sbr.rel (0) target = $region5
  $region4: #{_lambda_.3} parent=0 // pred_region
    _
  $region5: #{_lambda_.3} parent=0 // pred_fallthru
    _
  // Predicated region
  $region6: #{_lambda_.3} parent=0 // pred_check
    _
  $region7: #{_lambda_.3} parent=0 // pred_check_branch
    %11 = sbr.rel (0) target = $region9
  $region8: #{_lambda_.3} parent=0 // pred_region
    _
  $region9: #{_lambda_.3} parent=0 // pred_fallthru
    _
  // Predicated region
  $region10: #{_lambda_.3} parent=0 // pred_check
    _
  $region11: #{_lambda_.3} parent=0 // pred_check_branch
    %13 = sbr.rel (0) target = $region13
  $region12: #{_lambda_.3} parent=0 // pred_region
    _
  $region13: #{_lambda_.3} parent=0 // pred_fallthru
    _
  %v15 = vld [vmem:[%s0] sm:$0xff]
  %v16 = vld [vmem:[%s0 + $0x8] sm:$0xff]
  %v17 = vld [vmem:[%s0 + $0x10] sm:$0xff]
  %v18 = vld [vmem:[%s0 + $0x18] sm:$0xff]
  %v19 = vld [vmem:[%s0 + $0x20] sm:$0xff]
  %v20 = vld [vmem:[%s0 + $0x28] sm:$0xff]
  %v21 = vld [vmem:[%s0 + $0x30] sm:$0xff]
  %v22 = vld [vmem:[%s0 + $0x38] sm:$0xff]
  %v23 = vunpack.c.l.u8.bf16 %v15
  %v24 = vunpack.c.l.u8.bf16 %v16
  %v25 = vunpack.c.h.u8.bf16 %v15
  %v26 = vunpack.c.h.u8.bf16 %v16
  %v27 = vunpack.c.l.u8.bf16 %v17
  %v28 = vunpack.c.l.u8.bf16 %v18
  %v29 = vunpack.c.h.u8.bf16 %v17
  %v30 = vunpack.c.h.u8.bf16 %v18
  %v31 = vunpack.c.l.u8.bf16 %v19
  %v32 = vunpack.c.l.u8.bf16 %v20
  %v33 = vunpack.c.h.u8.bf16 %v19
  %v34 = vunpack.c.h.u8.bf16 %v20
  %v35 = vunpack.c.l.u8.bf16 %v21
  %v36 = vunpack.c.l.u8.bf16 %v22
  %v37 = vunpack.c.h.u8.bf16 %v21
  %v38 = vunpack.c.h.u8.bf16 %v22
  %v39 = vld [vmem:[%s1] sm:$0xf]
  %v40 = vld [vmem:[%s1 + $0x4] sm:$0xf]
  %v41 = vld [vmem:[%s1 + $0x8] sm:$0xf]
  %v42 = vld [vmem:[%s1 + $0xc] sm:$0xf]
  %v43 = vld [vmem:[%s1 + $0x10] sm:$0xf]
  %v44 = vld [vmem:[%s1 + $0x14] sm:$0xf]
  %v45 = vld [vmem:[%s1 + $0x18] sm:$0xf]
  %v46 = vld [vmem:[%s1 + $0x1c] sm:$0xf]
  %v47 = vld [vmem:[%s1 + $0x20] sm:$0xf]
  %v48 = vld [vmem:[%s1 + $0x24] sm:$0xf]
  %v49 = vld [vmem:[%s1 + $0x28] sm:$0xf]
  %v50 = vld [vmem:[%s1 + $0x2c] sm:$0xf]
  %v51 = vld [vmem:[%s1 + $0x30] sm:$0xf]
  %v52 = vld [vmem:[%s1 + $0x34] sm:$0xf]
  %v53 = vld [vmem:[%s1 + $0x38] sm:$0xf]
  %v54 = vld [vmem:[%s1 + $0x3c] sm:$0xf]
  %v55 = vld [vmem:[%s1 + $0x40] sm:$0xf]
  %v56 = vld [vmem:[%s1 + $0x44] sm:$0xf]
  %v57 = vld [vmem:[%s1 + $0x48] sm:$0xf]
  %v58 = vld [vmem:[%s1 + $0x4c] sm:$0xf]
  %v59 = vld [vmem:[%s1 + $0x50] sm:$0xf]
  %v60 = vld [vmem:[%s1 + $0x54] sm:$0xf]
  %v61 = vld [vmem:[%s1 + $0x58] sm:$0xf]
  %v62 = vld [vmem:[%s1 + $0x5c] sm:$0xf]
  %v63 = vld [vmem:[%s1 + $0x60] sm:$0xf]
  %v64 = vld [vmem:[%s1 + $0x64] sm:$0xf]
  %v65 = vld [vmem:[%s1 + $0x68] sm:$0xf]
  %v66 = vld [vmem:[%s1 + $0x6c] sm:$0xf]
  %v67 = vld [vmem:[%s1 + $0x70] sm:$0xf]
  %v68 = vld [vmem:[%s1 + $0x74] sm:$0xf]
  %v69 = vld [vmem:[%s1 + $0x78] sm:$0xf]
  %v70 = vld [vmem:[%s1 + $0x7c] sm:$0xf]
  %v71 = vld [vmem:[%s2] sm:$0x1]
  %v73 = vlaneseq
  %v74 = vshrl.u32 %v73, 7
  %v75 = vsub.s32 0, %v74
  %v76 = vrot.slane %v71, %v75
  %v110 = vunpack.c.l.b16 %v39
  %v111 = vunpack.c.l.b16 %v40
  %v112 = vunpack.c.l.b16 %v41
  %v113 = vunpack.c.l.b16 %v42
  %v114 = vunpack.c.l.b16 %v43
  %v115 = vunpack.c.l.b16 %v44
  %v116 = vunpack.c.l.b16 %v45
  %v117 = vunpack.c.l.b16 %v46
  %v118 = vunpack.c.l.b16 %v47
  %v119 = vunpack.c.l.b16 %v48
  %v120 = vunpack.c.l.b16 %v49
  %v121 = vunpack.c.l.b16 %v50
  %v122 = vunpack.c.l.b16 %v51
  %v123 = vunpack.c.l.b16 %v52
  %v124 = vunpack.c.l.b16 %v53
  %v125 = vunpack.c.l.b16 %v54
  %v126 = vunpack.c.l.b16 %v55
  %v127 = vunpack.c.l.b16 %v56
  %v128 = vunpack.c.l.b16 %v57
  %v129 = vunpack.c.l.b16 %v58
  %v130 = vunpack.c.l.b16 %v59
  %v131 = vunpack.c.l.b16 %v60
  %v132 = vunpack.c.l.b16 %v61
  %v133 = vunpack.c.l.b16 %v62
  %v134 = vunpack.c.l.b16 %v63
  %v135 = vunpack.c.l.b16 %v64
  %v136 = vunpack.c.l.b16 %v65
  %v137 = vunpack.c.l.b16 %v66
  %v138 = vunpack.c.l.b16 %v67
  %v139 = vunpack.c.l.b16 %v68
  %v140 = vunpack.c.l.b16 %v69
  %v141 = vunpack.c.l.b16 %v70
  %v142 = vpack.c.b16 %v111, %v110
  %v143 = vpack.c.b16 %v113, %v112
  %v144 = vpack.c.b16 %v115, %v114
  %v145 = vpack.c.b16 %v117, %v116
  %v146 = vpack.c.b16 %v119, %v118
  %v147 = vpack.c.b16 %v121, %v120
  %v148 = vpack.c.b16 %v123, %v122
  %v149 = vpack.c.b16 %v125, %v124
  %v150 = vpack.c.b16 %v127, %v126
  %v151 = vpack.c.b16 %v129, %v128
  %v152 = vpack.c.b16 %v131, %v130
  %v153 = vpack.c.b16 %v133, %v132
  %v154 = vpack.c.b16 %v135, %v134
  %v155 = vpack.c.b16 %v137, %v136
  %v156 = vpack.c.b16 %v139, %v138
  %v157 = vpack.c.b16 %v141, %v140
  %174 = vmatprep.subr.bf16.mxu0 0
  %175 = vmatpush1.bf16.msra.mxu0 %v149
  %176 = vmatprep.subr.bf16.mxu0 0
  %177 = vmatpush1.bf16.msra.mxu0 %v148
  %178 = vmatprep.subr.bf16.mxu0 0
  %179 = vmatpush1.bf16.msra.mxu0 %v147
  %180 = vmatprep.subr.bf16.mxu0 0
  %181 = vmatpush1.bf16.msra.mxu0 %v146
  %182 = vmatprep.subr.bf16.mxu0 0
  %183 = vmatpush1.bf16.msra.mxu0 %v145
  %184 = vmatprep.subr.bf16.mxu0 0
  %185 = vmatpush1.bf16.msra.mxu0 %v144
  %186 = vmatprep.subr.bf16.mxu0 0
  %187 = vmatpush1.bf16.msra.mxu0 %v143
  %188 = vmatprep.subr.bf16.mxu0 0
  %189 = vmatpush1.bf16.msra.mxu0 %v142
  %190 = vmatprep.subr.bf16.mxu0 0
  %191 = vmatpush2.bf16.msra.mxu0 %v157
  %192 = vmatprep.subr.bf16.mxu0 0
  %193 = vmatpush2.bf16.msra.mxu0 %v156
  %194 = vmatprep.subr.bf16.mxu0 0
  %195 = vmatpush2.bf16.msra.mxu0 %v155
  %196 = vmatprep.subr.bf16.mxu0 0
  %197 = vmatpush2.bf16.msra.mxu0 %v154
  %198 = vmatprep.subr.bf16.mxu0 0
  %199 = vmatpush2.bf16.msra.mxu0 %v153
  %200 = vmatprep.subr.bf16.mxu0 0
  %201 = vmatpush2.bf16.msra.mxu0 %v152
  %202 = vmatprep.subr.bf16.mxu0 0
  %203 = vmatpush2.bf16.msra.mxu0 %v151
  %204 = vmatprep.subr.bf16.mxu0 0
  %205 = vmatpush2.bf16.msra.mxu0 %v150
  %206 = vmatprep.mubr.bf16.mxu0 %v24
  %207 = vmatmul.mubr.bf16.gmra.mxu0 %v23
  %v208 = vpop.f32.mrf.mxu0
  %v209 = vadd.f32 %v76, %v208
  %v210 = vpop.f32.mrf.mxu0
  %v211 = vpop.f32.mrf.mxu0
  %v212 = vadd.f32 %v76, %v211
  %v213 = vpop.f32.mrf.mxu0
  %214 = vmatprep.mubr.bf16.mxu0 %v26
  %215 = vmatmul.mubr.bf16.gmra.mxu0 %v25
  %v216 = vpop.f32.mrf.mxu0
  %v217 = vadd.f32 %v76, %v216
  %v218 = vpop.f32.mrf.mxu0
  %v219 = vpop.f32.mrf.mxu0
  %v220 = vadd.f32 %v76, %v219
  %v221 = vpop.f32.mrf.mxu0
  %222 = vmatprep.mubr.bf16.mxu0 %v28
  %223 = vmatmul.mubr.bf16.gmra.mxu0 %v27
  %v224 = vpop.f32.mrf.mxu0
  %v225 = vadd.f32 %v76, %v224
  %v226 = vpop.f32.mrf.mxu0
  %v227 = vpop.f32.mrf.mxu0
  %v228 = vadd.f32 %v76, %v227
  %v229 = vpop.f32.mrf.mxu0
  %230 = vmatprep.mubr.bf16.mxu0 %v30
  %231 = vmatmul.mubr.bf16.gmra.mxu0 %v29
  %v232 = vpop.f32.mrf.mxu0
  %v233 = vadd.f32 %v76, %v232
  %v234 = vpop.f32.mrf.mxu0
  %v235 = vpop.f32.mrf.mxu0
  %v236 = vadd.f32 %v76, %v235
  %v237 = vpop.f32.mrf.mxu0
  %238 = vmatprep.mubr.bf16.mxu0 %v32
  %239 = vmatmul.mubr.bf16.gmra.mxu0 %v31
  %v240 = vpop.f32.mrf.mxu0
  %v241 = vadd.f32 %v76, %v240
  %v242 = vpop.f32.mrf.mxu0
  %v243 = vpop.f32.mrf.mxu0
  %v244 = vadd.f32 %v76, %v243
  %v245 = vpop.f32.mrf.mxu0
  %246 = vmatprep.mubr.bf16.mxu0 %v34
  %247 = vmatmul.mubr.bf16.gmra.mxu0 %v33
  %v248 = vpop.f32.mrf.mxu0
  %v249 = vadd.f32 %v76, %v248
  %v250 = vpop.f32.mrf.mxu0
  %v251 = vpop.f32.mrf.mxu0
  %v252 = vadd.f32 %v76, %v251
  %v253 = vpop.f32.mrf.mxu0
  %254 = vmatprep.mubr.bf16.mxu0 %v36
  %255 = vmatmul.mubr.bf16.gmra.mxu0 %v35
  %v256 = vpop.f32.mrf.mxu0
  %v257 = vadd.f32 %v76, %v256
  %v258 = vpop.f32.mrf.mxu0
  %v259 = vpop.f32.mrf.mxu0
  %v260 = vadd.f32 %v76, %v259
  %v261 = vpop.f32.mrf.mxu0
  %262 = vmatprep.mubr.bf16.mxu0 %v38
  %263 = vmatmul.mubr.bf16.gmra.mxu0 %v37
  %v264 = vpop.f32.mrf.mxu0
  %v265 = vadd.f32 %v76, %v264
  %v266 = vpop.f32.mrf.mxu0
  %v267 = vpop.f32.mrf.mxu0
  %v268 = vadd.f32 %v76, %v267
  %v269 = vpop.f32.mrf.mxu0
  %270 = vdwg.mxu0
  %v271 = vmax.f32 %v209, 0.0
  %v272 = vmax.f32 %v212, 0.0
  %v273 = vmax.f32 %v217, 0.0
  %v274 = vmax.f32 %v220, 0.0
  %v275 = vmax.f32 %v225, 0.0
  %v276 = vmax.f32 %v228, 0.0
  %v277 = vmax.f32 %v233, 0.0
  %v278 = vmax.f32 %v236, 0.0
  %v279 = vmax.f32 %v241, 0.0
  %v280 = vmax.f32 %v244, 0.0
  %v281 = vmax.f32 %v249, 0.0
  %v282 = vmax.f32 %v252, 0.0
  %v283 = vmax.f32 %v257, 0.0
  %v284 = vmax.f32 %v260, 0.0
  %v285 = vmax.f32 %v265, 0.0
  %v286 = vmax.f32 %v268, 0.0
  %v287 = vpack.c.bf16 %v272, %v271
  %v288 = vpack.c.bf16 %v274, %v273
  %v289 = vpack.c.bf16 %v276, %v275
  %v290 = vpack.c.bf16 %v278, %v277
  %v291 = vpack.c.bf16 %v280, %v279
  %v292 = vpack.c.bf16 %v282, %v281
  %v293 = vpack.c.bf16 %v284, %v283
  %v294 = vpack.c.bf16 %v286, %v285
  %v303 = vunpack.c.l.b16 %v287
  %v304 = vunpack.c.h.b16 %v287
  %v305 = vunpack.c.l.b16 %v288
  %v306 = vunpack.c.h.b16 %v288
  %v307 = vunpack.c.l.b16 %v289
  %v308 = vunpack.c.h.b16 %v289
  %v309 = vunpack.c.l.b16 %v290
  %v310 = vunpack.c.h.b16 %v290
  %v311 = vunpack.c.l.b16 %v291
  %v312 = vunpack.c.h.b16 %v291
  %v313 = vunpack.c.l.b16 %v292
  %v314 = vunpack.c.h.b16 %v292
  %v315 = vunpack.c.l.b16 %v293
  %v316 = vunpack.c.h.b16 %v293
  %v317 = vunpack.c.l.b16 %v294
  %v318 = vunpack.c.h.b16 %v294
  %v319 = vpack.c.b16 %v303, %v303
  %v320 = vpack.c.b16 %v304, %v304
  %v321 = vpack.c.b16 %v305, %v305
  %v322 = vpack.c.b16 %v306, %v306
  %v323 = vpack.c.b16 %v307, %v307
  %v324 = vpack.c.b16 %v308, %v308
  %v325 = vpack.c.b16 %v309, %v309
  %v326 = vpack.c.b16 %v310, %v310
  %v327 = vpack.c.b16 %v311, %v311
  %v328 = vpack.c.b16 %v312, %v312
  %v329 = vpack.c.b16 %v313, %v313
  %v330 = vpack.c.b16 %v314, %v314
  %v331 = vpack.c.b16 %v315, %v315
  %v332 = vpack.c.b16 %v316, %v316
  %v333 = vpack.c.b16 %v317, %v317
  %v334 = vpack.c.b16 %v318, %v318
  %351 = vst [vmem:[%s3] sm:$0xf] %v319
  %352 = vst [vmem:[%s3 + $0x4] sm:$0xf] %v320
  %353 = vst [vmem:[%s3 + $0x8] sm:$0xf] %v321
  %354 = vst [vmem:[%s3 + $0xc] sm:$0xf] %v322
  %355 = vst [vmem:[%s3 + $0x10] sm:$0xf] %v323
  %356 = vst [vmem:[%s3 + $0x14] sm:$0xf] %v324
  %357 = vst [vmem:[%s3 + $0x18] sm:$0xf] %v325
  %358 = vst [vmem:[%s3 + $0x1c] sm:$0xf] %v326
  %359 = vst [vmem:[%s3 + $0x20] sm:$0xf] %v327
  %360 = vst [vmem:[%s3 + $0x24] sm:$0xf] %v328
  %361 = vst [vmem:[%s3 + $0x28] sm:$0xf] %v329
  %362 = vst [vmem:[%s3 + $0x2c] sm:$0xf] %v330
  %363 = vst [vmem:[%s3 + $0x30] sm:$0xf] %v331
  %364 = vst [vmem:[%s3 + $0x34] sm:$0xf] %v332
  %365 = vst [vmem:[%s3 + $0x38] sm:$0xf] %v333
  %366 = vst [vmem:[%s3 + $0x3c] sm:$0xf] %v334
  // Predicated region
  $region14: #{_lambda_.3} parent=0 // pred_check
    _
  $region15: #{_lambda_.3} parent=0 // pred_check_branch
    %368 = sbr.rel (0) target = $region17
  $region16: #{_lambda_.3} parent=0 // pred_region
    _
  $region17: #{_lambda_.3} parent=0 // pred_fallthru
    _
  // Predicated region
  $region18: #{_lambda_.3} parent=0 // pred_check
    _
  $region19: #{_lambda_.3} parent=0 // pred_check_branch
    %370 = sbr.rel (0) target = $region21
  $region20: #{_lambda_.3} parent=0 // pred_region
    _
  $region21: #{_lambda_.3} parent=0 // pred_fallthru
    _

// kernel: _lambda_.4
$region0: #{_lambda_.4}
  #allocation0 [shape = 'u32[]', space=smem, size = 0x4, offset = 0x4, fixed_abs, tag = 'smem constant byte address 0x4 - core index']
  #allocation1 [shape = 'u32[144,128]{1,0:T(1,128)}', space=vmem, size = 0x12000, scoped, tag = 'internal scratch']
  %s0 = inlined_call_operand.vmem [shape: bf16[128,256], index: 0, kind: input, shape index: {}]
  %s1 = inlined_call_operand.vmem [shape: bf16[256,128], index: 1, kind: input, shape index: {}]
  %s2 = inlined_call_operand.vmem [shape: f32[1,128], index: 2, kind: input, shape index: {}]
  %s3 = inlined_call_operand.vmem [shape: bf16[128,128], index: 3, kind: output, shape index: {}]
  %s4 = sld [smem:[#allocation0]]
  $region22: #{_lambda_.4} parent=0
    _
  %s6 = ssub.s32 1, %s4
  %s7 = scalar_select 0, %s6, %s4
  // Predicated region
  $region2: #{_lambda_.4} parent=0 // pred_check
    _
  $region3: #{_lambda_.4} parent=0 // pred_check_branch
    %9 = sbr.rel (0) target = $region5
  $region4: #{_lambda_.4} parent=0 // pred_region
    _
  $region5: #{_lambda_.4} parent=0 // pred_fallthru
    _
  // Predicated region
  $region6: #{_lambda_.4} parent=0 // pred_check
    _
  $region7: #{_lambda_.4} parent=0 // pred_check_branch
    %11 = sbr.rel (0) target = $region9
  $region8: #{_lambda_.4} parent=0 // pred_region
    _
  $region9: #{_lambda_.4} parent=0 // pred_fallthru
    _
  // Predicated region
  $region10: #{_lambda_.4} parent=0 // pred_check
    _
  $region11: #{_lambda_.4} parent=0 // pred_check_branch
    %13 = sbr.rel (0) target = $region13
  $region12: #{_lambda_.4} parent=0 // pred_region
    _
  $region13: #{_lambda_.4} parent=0 // pred_fallthru
    _
  %v15 = vld [vmem:[%s0] sm:$0xff]
  %v16 = vld [vmem:[%s0 + $0x8] sm:$0xff]
  %v17 = vld [vmem:[%s0 + $0x10] sm:$0xff]
  %v18 = vld [vmem:[%s0 + $0x18] sm:$0xff]
  %v19 = vld [vmem:[%s0 + $0x20] sm:$0xff]
  %v20 = vld [vmem:[%s0 + $0x28] sm:$0xff]
  %v21 = vld [vmem:[%s0 + $0x30] sm:$0xff]
  %v22 = vld [vmem:[%s0 + $0x38] sm:$0xff]
  %v23 = vld [vmem:[%s0 + $0x40] sm:$0xff]
  %v24 = vld [vmem:[%s0 + $0x48] sm:$0xff]
  %v25 = vld [vmem:[%s0 + $0x50] sm:$0xff]
  %v26 = vld [vmem:[%s0 + $0x58] sm:$0xff]
  %v27 = vld [vmem:[%s0 + $0x60] sm:$0xff]
  %v28 = vld [vmem:[%s0 + $0x68] sm:$0xff]
  %v29 = vld [vmem:[%s0 + $0x70] sm:$0xff]
  %v30 = vld [vmem:[%s0 + $0x78] sm:$0xff]
  %v31 = vld [vmem:[%s1] sm:$0xf]
  %v32 = vld [vmem:[%s1 + $0x4] sm:$0xf]
  %v33 = vld [vmem:[%s1 + $0x8] sm:$0xf]
  %v34 = vld [vmem:[%s1 + $0xc] sm:$0xf]
  %v35 = vld [vmem:[%s1 + $0x10] sm:$0xf]
  %v36 = vld [vmem:[%s1 + $0x14] sm:$0xf]
  %v37 = vld [vmem:[%s1 + $0x18] sm:$0xf]
  %v38 = vld [vmem:[%s1 + $0x1c] sm:$0xf]
  %v39 = vld [vmem:[%s1 + $0x20] sm:$0xf]
  %v40 = vld [vmem:[%s1 + $0x24] sm:$0xf]
  %v41 = vld [vmem:[%s1 + $0x28] sm:$0xf]
  %v42 = vld [vmem:[%s1 + $0x2c] sm:$0xf]
  %v43 = vld [vmem:[%s1 + $0x30] sm:$0xf]
  %v44 = vld [vmem:[%s1 + $0x34] sm:$0xf]
  %v45 = vld [vmem:[%s1 + $0x38] sm:$0xf]
  %v46 = vld [vmem:[%s1 + $0x3c] sm:$0xf]
  %v47 = vld [vmem:[%s1 + $0x40] sm:$0xf]
  %v48 = vld [vmem:[%s1 + $0x44] sm:$0xf]
  %v49 = vld [vmem:[%s1 + $0x48] sm:$0xf]
  %v50 = vld [vmem:[%s1 + $0x4c] sm:$0xf]
  %v51 = vld [vmem:[%s1 + $0x50] sm:$0xf]
  %v52 = vld [vmem:[%s1 + $0x54] sm:$0xf]
  %v53 = vld [vmem:[%s1 + $0x58] sm:$0xf]
  %v54 = vld [vmem:[%s1 + $0x5c] sm:$0xf]
  %v55 = vld [vmem:[%s1 + $0x60] sm:$0xf]
  %v56 = vld [vmem:[%s1 + $0x64] sm:$0xf]
  %v57 = vld [vmem:[%s1 + $0x68] sm:$0xf]
  %v58 = vld [vmem:[%s1 + $0x6c] sm:$0xf]
  %v59 = vld [vmem:[%s1 + $0x70] sm:$0xf]
  %v60 = vld [vmem:[%s1 + $0x74] sm:$0xf]
  %v61 = vld [vmem:[%s1 + $0x78] sm:$0xf]
  %v62 = vld [vmem:[%s1 + $0x7c] sm:$0xf]
  %v63 = vld [vmem:[%s2] sm:$0x1]
  %v65 = vlaneseq
  %v66 = vshrl.u32 %v65, 7
  %v67 = vsub.s32 0, %v66
  %v68 = vrot.slane %v63, %v67
  %v86 = vunpack.c.l.b16 %v15
  %v87 = vunpack.c.h.b16 %v15
  %v88 = vunpack.c.l.b16 %v16
  %v89 = vunpack.c.h.b16 %v16
  %v90 = vunpack.c.l.b16 %v17
  %v91 = vunpack.c.h.b16 %v17
  %v92 = vunpack.c.l.b16 %v18
  %v93 = vunpack.c.h.b16 %v18
  %v94 = vunpack.c.l.b16 %v19
  %v95 = vunpack.c.h.b16 %v19
  %v96 = vunpack.c.l.b16 %v20
  %v97 = vunpack.c.h.b16 %v20
  %v98 = vunpack.c.l.b16 %v21
  %v99 = vunpack.c.h.b16 %v21
  %v100 = vunpack.c.l.b16 %v22
  %v101 = vunpack.c.h.b16 %v22
  %v102 = vunpack.c.l.b16 %v23
  %v103 = vunpack.c.h.b16 %v23
  %v104 = vunpack.c.l.b16 %v24
  %v105 = vunpack.c.h.b16 %v24
  %v106 = vunpack.c.l.b16 %v25
  %v107 = vunpack.c.h.b16 %v25
  %v108 = vunpack.c.l.b16 %v26
  %v109 = vunpack.c.h.b16 %v26
  %v110 = vunpack.c.l.b16 %v27
  %v111 = vunpack.c.h.b16 %v27
  %v112 = vunpack.c.l.b16 %v28
  %v113 = vunpack.c.h.b16 %v28
  %v114 = vunpack.c.l.b16 %v29
  %v115 = vunpack.c.h.b16 %v29
  %v116 = vunpack.c.l.b16 %v30
  %v117 = vunpack.c.h.b16 %v30
  %v118 = vpack.c.b16 %v88, %v86
  %v119 = vpack.c.b16 %v89, %v87
  %v120 = vpack.c.b16 %v92, %v90
  %v121 = vpack.c.b16 %v93, %v91
  %v122 = vpack.c.b16 %v96, %v94
  %v123 = vpack.c.b16 %v97, %v95
  %v124 = vpack.c.b16 %v100, %v98
  %v125 = vpack.c.b16 %v101, %v99
  %v126 = vpack.c.b16 %v104, %v102
  %v127 = vpack.c.b16 %v105, %v103
  %v128 = vpack.c.b16 %v108, %v106
  %v129 = vpack.c.b16 %v109, %v107
  %v130 = vpack.c.b16 %v112, %v110
  %v131 = vpack.c.b16 %v113, %v111
  %v132 = vpack.c.b16 %v116, %v114
  %v133 = vpack.c.b16 %v117, %v115
  %v182 = vunpack.c.l.b16 %v31
  %v183 = vunpack.c.l.b16 %v32
  %v184 = vunpack.c.l.b16 %v33
  %v185 = vunpack.c.l.b16 %v34
  %v186 = vunpack.c.l.b16 %v35
  %v187 = vunpack.c.l.b16 %v36
  %v188 = vunpack.c.l.b16 %v37
  %v189 = vunpack.c.l.b16 %v38
  %v190 = vunpack.c.l.b16 %v39
  %v191 = vunpack.c.l.b16 %v40
  %v192 = vunpack.c.l.b16 %v41
  %v193 = vunpack.c.l.b16 %v42
  %v194 = vunpack.c.l.b16 %v43
  %v195 = vunpack.c.l.b16 %v44
  %v196 = vunpack.c.l.b16 %v45
  %v197 = vunpack.c.l.b16 %v46
  %v198 = vunpack.c.l.b16 %v47
  %v199 = vunpack.c.l.b16 %v48
  %v200 = vunpack.c.l.b16 %v49
  %v201 = vunpack.c.l.b16 %v50
  %v202 = vunpack.c.l.b16 %v51
  %v203 = vunpack.c.l.b16 %v52
  %v204 = vunpack.c.l.b16 %v53
  %v205 = vunpack.c.l.b16 %v54
  %v206 = vunpack.c.l.b16 %v55
  %v207 = vunpack.c.l.b16 %v56
  %v208 = vunpack.c.l.b16 %v57
  %v209 = vunpack.c.l.b16 %v58
  %v210 = vunpack.c.l.b16 %v59
  %v211 = vunpack.c.l.b16 %v60
  %v212 = vunpack.c.l.b16 %v61
  %v213 = vunpack.c.l.b16 %v62
  %v214 = vpack.c.b16 %v183, %v182
  %v215 = vpack.c.b16 %v185, %v184
  %v216 = vpack.c.b16 %v187, %v186
  %v217 = vpack.c.b16 %v189, %v188
  %v218 = vpack.c.b16 %v191, %v190
  %v219 = vpack.c.b16 %v193, %v192
  %v220 = vpack.c.b16 %v195, %v194
  %v221 = vpack.c.b16 %v197, %v196
  %v222 = vpack.c.b16 %v199, %v198
  %v223 = vpack.c.b16 %v201, %v200
  %v224 = vpack.c.b16 %v203, %v202
  %v225 = vpack.c.b16 %v205, %v204
  %v226 = vpack.c.b16 %v207, %v206
  %v227 = vpack.c.b16 %v209, %v208
  %v228 = vpack.c.b16 %v211, %v210
  %v229 = vpack.c.b16 %v213, %v212
  %246 = vmatprep.subr.bf16.mxu0 0
  %247 = vmatpush1.bf16.msra.mxu0 %v221
  %248 = vmatprep.subr.bf16.mxu0 0
  %249 = vmatpush1.bf16.msra.mxu0 %v220
  %250 = vmatprep.subr.bf16.mxu0 0
  %251 = vmatpush1.bf16.msra.mxu0 %v219
  %252 = vmatprep.subr.bf16.mxu0 0
  %253 = vmatpush1.bf16.msra.mxu0 %v218
  %254 = vmatprep.subr.bf16.mxu0 0
  %255 = vmatpush1.bf16.msra.mxu0 %v217
  %256 = vmatprep.subr.bf16.mxu0 0
  %257 = vmatpush1.bf16.msra.mxu0 %v216
  %258 = vmatprep.subr.bf16.mxu0 0
  %259 = vmatpush1.bf16.msra.mxu0 %v215
  %260 = vmatprep.subr.bf16.mxu0 0
  %261 = vmatpush1.bf16.msra.mxu0 %v214
  %262 = vmatprep.subr.bf16.mxu0 0
  %263 = vmatpush2.bf16.msra.mxu0 %v229
  %264 = vmatprep.subr.bf16.mxu0 0
  %265 = vmatpush2.bf16.msra.mxu0 %v228
  %266 = vmatprep.subr.bf16.mxu0 0
  %267 = vmatpush2.bf16.msra.mxu0 %v227
  %268 = vmatprep.subr.bf16.mxu0 0
  %269 = vmatpush2.bf16.msra.mxu0 %v226
  %270 = vmatprep.subr.bf16.mxu0 0
  %271 = vmatpush2.bf16.msra.mxu0 %v225
  %272 = vmatprep.subr.bf16.mxu0 0
  %273 = vmatpush2.bf16.msra.mxu0 %v224
  %274 = vmatprep.subr.bf16.mxu0 0
  %275 = vmatpush2.bf16.msra.mxu0 %v223
  %276 = vmatprep.subr.bf16.mxu0 0
  %277 = vmatpush2.bf16.msra.mxu0 %v222
  %278 = vmatprep.mubr.bf16.mxu0 %v119
  %279 = vmatmul.mubr.bf16.gmra.mxu0 %v118
  %v280 = vpop.f32.mrf.mxu0
  %v281 = vadd.f32 %v68, %v280
  %v282 = vpop.f32.mrf.mxu0
  %v283 = vpop.f32.mrf.mxu0
  %v284 = vadd.f32 %v68, %v283
  %v285 = vpop.f32.mrf.mxu0
  %286 = vmatprep.mubr.bf16.mxu0 %v121
  %287 = vmatmul.mubr.bf16.gmra.mxu0 %v120
  %v288 = vpop.f32.mrf.mxu0
  %v289 = vadd.f32 %v68, %v288
  %v290 = vpop.f32.mrf.mxu0
  %v291 = vpop.f32.mrf.mxu0
  %v292 = vadd.f32 %v68, %v291
  %v293 = vpop.f32.mrf.mxu0
  %294 = vmatprep.mubr.bf16.mxu0 %v123
  %295 = vmatmul.mubr.bf16.gmra.mxu0 %v122
  %v296 = vpop.f32.mrf.mxu0
  %v297 = vadd.f32 %v68, %v296
  %v298 = vpop.f32.mrf.mxu0
  %v299 = vpop.f32.mrf.mxu0
  %v300 = vadd.f32 %v68, %v299
  %v301 = vpop.f32.mrf.mxu0
  %302 = vmatprep.mubr.bf16.mxu0 %v125
  %303 = vmatmul.mubr.bf16.gmra.mxu0 %v124
  %v304 = vpop.f32.mrf.mxu0
  %v305 = vadd.f32 %v68, %v304
  %v306 = vpop.f32.mrf.mxu0
  %v307 = vpop.f32.mrf.mxu0
  %v308 = vadd.f32 %v68, %v307
  %v309 = vpop.f32.mrf.mxu0
  %310 = vmatprep.mubr.bf16.mxu0 %v127
  %311 = vmatmul.mubr.bf16.gmra.mxu0 %v126
  %v312 = vpop.f32.mrf.mxu0
  %v313 = vadd.f32 %v68, %v312
  %v314 = vpop.f32.mrf.mxu0
  %v315 = vpop.f32.mrf.mxu0
  %v316 = vadd.f32 %v68, %v315
  %v317 = vpop.f32.mrf.mxu0
  %318 = vmatprep.mubr.bf16.mxu0 %v129
  %319 = vmatmul.mubr.bf16.gmra.mxu0 %v128
  %v320 = vpop.f32.mrf.mxu0
  %v321 = vadd.f32 %v68, %v320
  %v322 = vpop.f32.mrf.mxu0
  %v323 = vpop.f32.mrf.mxu0
  %v324 = vadd.f32 %v68, %v323
  %v325 = vpop.f32.mrf.mxu0
  %326 = vmatprep.mubr.bf16.mxu0 %v131
  %327 = vmatmul.mubr.bf16.gmra.mxu0 %v130
  %v328 = vpop.f32.mrf.mxu0
  %v329 = vadd.f32 %v68, %v328
  %v330 = vpop.f32.mrf.mxu0
  %v331 = vpop.f32.mrf.mxu0
  %v332 = vadd.f32 %v68, %v331
  %v333 = vpop.f32.mrf.mxu0
  %334 = vmatprep.mubr.bf16.mxu0 %v133
  %335 = vmatmul.mubr.bf16.gmra.mxu0 %v132
  %v336 = vpop.f32.mrf.mxu0
  %v337 = vadd.f32 %v68, %v336
  %v338 = vpop.f32.mrf.mxu0
  %v339 = vpop.f32.mrf.mxu0
  %v340 = vadd.f32 %v68, %v339
  %v341 = vpop.f32.mrf.mxu0
  %342 = vdwg.mxu0
  %v343 = vmax.f32 %v281, 0.0
  %v344 = vmax.f32 %v284, 0.0
  %v345 = vmax.f32 %v289, 0.0
  %v346 = vmax.f32 %v292, 0.0
  %v347 = vmax.f32 %v297, 0.0
  %v348 = vmax.f32 %v300, 0.0
  %v349 = vmax.f32 %v305, 0.0
  %v350 = vmax.f32 %v308, 0.0
  %v351 = vmax.f32 %v313, 0.0
  %v352 = vmax.f32 %v316, 0.0
  %v353 = vmax.f32 %v321, 0.0
  %v354 = vmax.f32 %v324, 0.0
  %v355 = vmax.f32 %v329, 0.0
  %v356 = vmax.f32 %v332, 0.0
  %v357 = vmax.f32 %v337, 0.0
  %v358 = vmax.f32 %v340, 0.0
  %v359 = vpack.c.bf16 %v344, %v343
  %v360 = vpack.c.bf16 %v346, %v345
  %v361 = vpack.c.bf16 %v348, %v347
  %v362 = vpack.c.bf16 %v350, %v349
  %v363 = vpack.c.bf16 %v352, %v351
  %v364 = vpack.c.bf16 %v354, %v353
  %v365 = vpack.c.bf16 %v356, %v355
  %v366 = vpack.c.bf16 %v358, %v357
  %v375 = vunpack.c.l.b16 %v359
  %v376 = vunpack.c.h.b16 %v359
  %v377 = vunpack.c.l.b16 %v360
  %v378 = vunpack.c.h.b16 %v360
  %v379 = vunpack.c.l.b16 %v361
  %v380 = vunpack.c.h.b16 %v361
  %v381 = vunpack.c.l.b16 %v362
  %v382 = vunpack.c.h.b16 %v362
  %v383 = vunpack.c.l.b16 %v363
  %v384 = vunpack.c.h.b16 %v363
  %v385 = vunpack.c.l.b16 %v364
  %v386 = vunpack.c.h.b16 %v364
  %v387 = vunpack.c.l.b16 %v365
  %v388 = vunpack.c.h.b16 %v365
  %v389 = vunpack.c.l.b16 %v366
  %v390 = vunpack.c.h.b16 %v366
  %v391 = vpack.c.b16 %v375, %v375
  %v392 = vpack.c.b16 %v376, %v376
  %v393 = vpack.c.b16 %v377, %v377
  %v394 = vpack.c.b16 %v378, %v378
  %v395 = vpack.c.b16 %v379, %v379
  %v396 = vpack.c.b16 %v380, %v380
  %v397 = vpack.c.b16 %v381, %v381
  %v398 = vpack.c.b16 %v382, %v382
  %v399 = vpack.c.b16 %v383, %v383
  %v400 = vpack.c.b16 %v384, %v384
  %v401 = vpack.c.b16 %v385, %v385
  %v402 = vpack.c.b16 %v386, %v386
  %v403 = vpack.c.b16 %v387, %v387
  %v404 = vpack.c.b16 %v388, %v388
  %v405 = vpack.c.b16 %v389, %v389
  %v406 = vpack.c.b16 %v390, %v390
  %423 = vst [vmem:[%s3] sm:$0xf] %v391
  %424 = vst [vmem:[%s3 + $0x4] sm:$0xf] %v392
  %425 = vst [vmem:[%s3 + $0x8] sm:$0xf] %v393
  %426 = vst [vmem:[%s3 + $0xc] sm:$0xf] %v394
  %427 = vst [vmem:[%s3 + $0x10] sm:$0xf] %v395
  %428 = vst [vmem:[%s3 + $0x14] sm:$0xf] %v396
  %429 = vst [vmem:[%s3 + $0x18] sm:$0xf] %v397
  %430 = vst [vmem:[%s3 + $0x1c] sm:$0xf] %v398
  %431 = vst [vmem:[%s3 + $0x20] sm:$0xf] %v399
  %432 = vst [vmem:[%s3 + $0x24] sm:$0xf] %v400
  %433 = vst [vmem:[%s3 + $0x28] sm:$0xf] %v401
  %434 = vst [vmem:[%s3 + $0x2c] sm:$0xf] %v402
  %435 = vst [vmem:[%s3 + $0x30] sm:$0xf] %v403
  %436 = vst [vmem:[%s3 + $0x34] sm:$0xf] %v404
  %437 = vst [vmem:[%s3 + $0x38] sm:$0xf] %v405
  %438 = vst [vmem:[%s3 + $0x3c] sm:$0xf] %v406
  // Predicated region
  $region14: #{_lambda_.4} parent=0 // pred_check
    _
  $region15: #{_lambda_.4} parent=0 // pred_check_branch
    %440 = sbr.rel (0) target = $region17
  $region16: #{_lambda_.4} parent=0 // pred_region
    _
  $region17: #{_lambda_.4} parent=0 // pred_fallthru
    _
  // Predicated region
  $region18: #{_lambda_.4} parent=0 // pred_check
    _
  $region19: #{_lambda_.4} parent=0 // pred_check_branch
    %442 = sbr.rel (0) target = $region21
  $region20: #{_lambda_.4} parent=0 // pred_region
    _
  $region21: #{_lambda_.4} parent=0 // pred_fallthru
    _

// kernel: _lambda_.5
$region0: #{_lambda_.5}
  #allocation0 [shape = 'u32[]', space=smem, size = 0x4, offset = 0x4, fixed_abs, tag = 'smem constant byte address 0x4 - core index']
  #allocation1 [shape = 'u32[144,128]{1,0:T(1,128)}', space=vmem, size = 0x12000, scoped, tag = 'internal scratch']
  %s0 = inlined_call_operand.vmem [shape: bf16[128,128], index: 0, kind: input, shape index: {}]
  %s1 = inlined_call_operand.vmem [shape: bf16[128,256], index: 1, kind: input, shape index: {}]
  %s2 = inlined_call_operand.vmem [shape: f32[1,256], index: 2, kind: input, shape index: {}]
  %s3 = inlined_call_operand.vmem [shape: bf16[256,128], index: 3, kind: input, shape index: {}]
  %s4 = inlined_call_operand.vmem [shape: f32[1,128], index: 4, kind: input, shape index: {}]
  %s5 = inlined_call_operand.vmem [shape: f32[128,128], index: 5, kind: output, shape index: {}]
  %s6 = sld [smem:[#allocation0]]
  $region30: #{_lambda_.5} parent=0
    _
  %s8 = ssub.s32 1, %s6
  %s9 = scalar_select 0, %s8, %s6
  // Predicated region
  $region2: #{_lambda_.5} parent=0 // pred_check
    _
  $region3: #{_lambda_.5} parent=0 // pred_check_branch
    %11 = sbr.rel (0) target = $region5
  $region4: #{_lambda_.5} parent=0 // pred_region
    _
  $region5: #{_lambda_.5} parent=0 // pred_fallthru
    _
  // Predicated region
  $region6: #{_lambda_.5} parent=0 // pred_check
    _
  $region7: #{_lambda_.5} parent=0 // pred_check_branch
    %13 = sbr.rel (0) target = $region9
  $region8: #{_lambda_.5} parent=0 // pred_region
    _
  $region9: #{_lambda_.5} parent=0 // pred_fallthru
    _
  // Predicated region
  $region10: #{_lambda_.5} parent=0 // pred_check
    _
  $region11: #{_lambda_.5} parent=0 // pred_check_branch
    %15 = sbr.rel (0) target = $region13
  $region12: #{_lambda_.5} parent=0 // pred_region
    _
  $region13: #{_lambda_.5} parent=0 // pred_fallthru
    _
  // Predicated region
  $region14: #{_lambda_.5} parent=0 // pred_check
    _
  $region15: #{_lambda_.5} parent=0 // pred_check_branch
    %17 = sbr.rel (0) target = $region17
  $region16: #{_lambda_.5} parent=0 // pred_region
    _
  $region17: #{_lambda_.5} parent=0 // pred_fallthru
    _
  // Predicated region
  $region18: #{_lambda_.5} parent=0 // pred_check
    _
  $region19: #{_lambda_.5} parent=0 // pred_check_branch
    %19 = sbr.rel (0) target = $region21
  $region20: #{_lambda_.5} parent=0 // pred_region
    _
  $region21: #{_lambda_.5} parent=0 // pred_fallthru
    _
  %v21 = vld [vmem:[%s0] sm:$0xf]
  %v22 = vld [vmem:[%s0 + $0x4] sm:$0xf]
  %v23 = vld [vmem:[%s0 + $0x8] sm:$0xf]
  %v24 = vld [vmem:[%s0 + $0xc] sm:$0xf]
  %v25 = vld [vmem:[%s0 + $0x10] sm:$0xf]
  %v26 = vld [vmem:[%s0 + $0x14] sm:$0xf]
  %v27 = vld [vmem:[%s0 + $0x18] sm:$0xf]
  %v28 = vld [vmem:[%s0 + $0x1c] sm:$0xf]
  %v29 = vld [vmem:[%s0 + $0x20] sm:$0xf]
  %v30 = vld [vmem:[%s0 + $0x24] sm:$0xf]
  %v31 = vld [vmem:[%s0 + $0x28] sm:$0xf]
  %v32 = vld [vmem:[%s0 + $0x2c] sm:$0xf]
  %v33 = vld [vmem:[%s0 + $0x30] sm:$0xf]
  %v34 = vld [vmem:[%s0 + $0x34] sm:$0xf]
  %v35 = vld [vmem:[%s0 + $0x38] sm:$0xf]
  %v36 = vld [vmem:[%s0 + $0x3c] sm:$0xf]
  %v37 = vld [vmem:[%s1] sm:$0xff]
  %v38 = vld [vmem:[%s1 + $0x8] sm:$0xff]
  %v39 = vld [vmem:[%s1 + $0x10] sm:$0xff]
  %v40 = vld [vmem:[%s1 + $0x18] sm:$0xff]
  %v41 = vld [vmem:[%s1 + $0x20] sm:$0xff]
  %v42 = vld [vmem:[%s1 + $0x28] sm:$0xff]
  %v43 = vld [vmem:[%s1 + $0x30] sm:$0xff]
  %v44 = vld [vmem:[%s1 + $0x38] sm:$0xff]
  %v45 = vld [vmem:[%s1 + $0x40] sm:$0xff]
  %v46 = vld [vmem:[%s1 + $0x48] sm:$0xff]
  %v47 = vld [vmem:[%s1 + $0x50] sm:$0xff]
  %v48 = vld [vmem:[%s1 + $0x58] sm:$0xff]
  %v49 = vld [vmem:[%s1 + $0x60] sm:$0xff]
  %v50 = vld [vmem:[%s1 + $0x68] sm:$0xff]
  %v51 = vld [vmem:[%s1 + $0x70] sm:$0xff]
  %v52 = vld [vmem:[%s1 + $0x78] sm:$0xff]
  %v53 = vld [vmem:[%s2] sm:$0x3]
  %v55 = vlaneseq
  %v56 = vshrl.u32 %v55, 7
  %v57 = vsub.s32 0, %v56
  %v58 = vrot.slane %v53, %v57
  %v59 = vlaneseq
  %v60 = vshrl.u32 %v59, 7
  %v61 = vsub.s32 1, %v60
  %v62 = vrot.slane %v53, %v61
  %v81 = vunpack.c.l.b16 %v21
  %v82 = vunpack.c.l.b16 %v22
  %v83 = vunpack.c.l.b16 %v23
  %v84 = vunpack.c.l.b16 %v24
  %v85 = vunpack.c.l.b16 %v25
  %v86 = vunpack.c.l.b16 %v26
  %v87 = vunpack.c.l.b16 %v27
  %v88 = vunpack.c.l.b16 %v28
  %v89 = vunpack.c.l.b16 %v29
  %v90 = vunpack.c.l.b16 %v30
  %v91 = vunpack.c.l.b16 %v31
  %v92 = vunpack.c.l.b16 %v32
  %v93 = vunpack.c.l.b16 %v33
  %v94 = vunpack.c.l.b16 %v34
  %v95 = vunpack.c.l.b16 %v35
  %v96 = vunpack.c.l.b16 %v36
  %v97 = vpack.c.b16 %v82, %v81
  %v98 = vpack.c.b16 %v84, %v83
  %v99 = vpack.c.b16 %v86, %v85
  %v100 = vpack.c.b16 %v88, %v87
  %v101 = vpack.c.b16 %v90, %v89
  %v102 = vpack.c.b16 %v92, %v91
  %v103 = vpack.c.b16 %v94, %v93
  %v104 = vpack.c.b16 %v96, %v95
  %v129 = vunpack.c.l.b16 %v37
  %v130 = vunpack.c.h.b16 %v37
  %v131 = vunpack.c.l.b16 %v38
  %v132 = vunpack.c.h.b16 %v38
  %v133 = vunpack.c.l.b16 %v39
  %v134 = vunpack.c.h.b16 %v39
  %v135 = vunpack.c.l.b16 %v40
  %v136 = vunpack.c.h.b16 %v40
  %v137 = vunpack.c.l.b16 %v41
  %v138 = vunpack.c.h.b16 %v41
  %v139 = vunpack.c.l.b16 %v42
  %v140 = vunpack.c.h.b16 %v42
  %v141 = vunpack.c.l.b16 %v43
  %v142 = vunpack.c.h.b16 %v43
  %v143 = vunpack.c.l.b16 %v44
  %v144 = vunpack.c.h.b16 %v44
  %v145 = vunpack.c.l.b16 %v45
  %v146 = vunpack.c.h.b16 %v45
  %v147 = vunpack.c.l.b16 %v46
  %v148 = vunpack.c.h.b16 %v46
  %v149 = vunpack.c.l.b16 %v47
  %v150 = vunpack.c.h.b16 %v47
  %v151 = vunpack.c.l.b16 %v48
  %v152 = vunpack.c.h.b16 %v48
  %v153 = vunpack.c.l.b16 %v49
  %v154 = vunpack.c.h.b16 %v49
  %v155 = vunpack.c.l.b16 %v50
  %v156 = vunpack.c.h.b16 %v50
  %v157 = vunpack.c.l.b16 %v51
  %v158 = vunpack.c.h.b16 %v51
  %v159 = vunpack.c.l.b16 %v52
  %v160 = vunpack.c.h.b16 %v52
  %v161 = vpack.c.b16 %v131, %v129
  %v162 = vpack.c.b16 %v132, %v130
  %v163 = vpack.c.b16 %v135, %v133
  %v164 = vpack.c.b16 %v136, %v134
  %v165 = vpack.c.b16 %v139, %v137
  %v166 = vpack.c.b16 %v140, %v138
  %v167 = vpack.c.b16 %v143, %v141
  %v168 = vpack.c.b16 %v144, %v142
  %v169 = vpack.c.b16 %v147, %v145
  %v170 = vpack.c.b16 %v148, %v146
  %v171 = vpack.c.b16 %v151, %v149
  %v172 = vpack.c.b16 %v152, %v150
  %v173 = vpack.c.b16 %v155, %v153
  %v174 = vpack.c.b16 %v156, %v154
  %v175 = vpack.c.b16 %v159, %v157
  %v176 = vpack.c.b16 %v160, %v158
  %193 = vmatprep.subr.bf16.mxu0 %v176
  %194 = vmatpush1.bf16.msra.mxu0 %v175
  %195 = vmatprep.subr.bf16.mxu0 %v174
  %196 = vmatpush1.bf16.msra.mxu0 %v173
  %197 = vmatprep.subr.bf16.mxu0 %v172
  %198 = vmatpush1.bf16.msra.mxu0 %v171
  %199 = vmatprep.subr.bf16.mxu0 %v170
  %200 = vmatpush1.bf16.msra.mxu0 %v169
  %201 = vmatprep.subr.bf16.mxu0 %v168
  %202 = vmatpush1.bf16.msra.mxu0 %v167
  %203 = vmatprep.subr.bf16.mxu0 %v166
  %204 = vmatpush1.bf16.msra.mxu0 %v165
  %205 = vmatprep.subr.bf16.mxu0 %v164
  %206 = vmatpush1.bf16.msra.mxu0 %v163
  %207 = vmatprep.subr.bf16.mxu0 %v162
  %208 = vmatpush1.bf16.msra.mxu0 %v161
  %209 = vmatprep.subr.bf16.mxu0 0
  %210 = vmatpush2.bf16.msra.mxu0 0
  %211 = vmatprep.subr.bf16.mxu0 0
  %212 = vmatpush2.bf16.msra.mxu0 0
  %213 = vmatprep.subr.bf16.mxu0 0
  %214 = vmatpush2.bf16.msra.mxu0 0
  %215 = vmatprep.subr.bf16.mxu0 0
  %216 = vmatpush2.bf16.msra.mxu0 0
  %217 = vmatprep.subr.bf16.mxu0 0
  %218 = vmatpush2.bf16.msra.mxu0 0
  %219 = vmatprep.subr.bf16.mxu0 0
  %220 = vmatpush2.bf16.msra.mxu0 0
  %221 = vmatprep.subr.bf16.mxu0 0
  %222 = vmatpush2.bf16.msra.mxu0 0
  %223 = vmatprep.subr.bf16.mxu0 0
  %224 = vmatpush2.bf16.msra.mxu0 0
  %225 = vmatprep.mubr.bf16.mxu0 0
  %226 = vmatmul.mubr.bf16.gmra.mxu0 %v97
  %v227 = vpop.f32.mrf.mxu0
  %v228 = vadd.f32 %v58, %v227
  %v229 = vpop.f32.mrf.mxu0
  %v230 = vadd.f32 %v62, %v229
  %v231 = vpop.f32.mrf.mxu0
  %v232 = vadd.f32 %v58, %v231
  %v233 = vpop.f32.mrf.mxu0
  %v234 = vadd.f32 %v62, %v233
  %235 = vmatprep.mubr.bf16.mxu0 0
  %236 = vmatmul.mubr.bf16.gmra.mxu0 %v98
  %v237 = vpop.f32.mrf.mxu0
  %v238 = vadd.f32 %v58, %v237
  %v239 = vpop.f32.mrf.mxu0
  %v240 = vadd.f32 %v62, %v239
  %v241 = vpop.f32.mrf.mxu0
  %v242 = vadd.f32 %v58, %v241
  %v243 = vpop.f32.mrf.mxu0
  %v244 = vadd.f32 %v62, %v243
  %245 = vmatprep.mubr.bf16.mxu0 0
  %246 = vmatmul.mubr.bf16.gmra.mxu0 %v99
  %v247 = vpop.f32.mrf.mxu0
  %v248 = vadd.f32 %v58, %v247
  %v249 = vpop.f32.mrf.mxu0
  %v250 = vadd.f32 %v62, %v249
  %v251 = vpop.f32.mrf.mxu0
  %v252 = vadd.f32 %v58, %v251
  %v253 = vpop.f32.mrf.mxu0
  %v254 = vadd.f32 %v62, %v253
  %255 = vmatprep.mubr.bf16.mxu0 0
  %256 = vmatmul.mubr.bf16.gmra.mxu0 %v100
  %v257 = vpop.f32.mrf.mxu0
  %v258 = vadd.f32 %v58, %v257
  %v259 = vpop.f32.mrf.mxu0
  %v260 = vadd.f32 %v62, %v259
  %v261 = vpop.f32.mrf.mxu0
  %v262 = vadd.f32 %v58, %v261
  %v263 = vpop.f32.mrf.mxu0
  %v264 = vadd.f32 %v62, %v263
  %265 = vmatprep.mubr.bf16.mxu0 0
  %266 = vmatmul.mubr.bf16.gmra.mxu0 %v101
  %v267 = vpop.f32.mrf.mxu0
  %v268 = vadd.f32 %v58, %v267
  %v269 = vpop.f32.mrf.mxu0
  %v270 = vadd.f32 %v62, %v269
  %v271 = vpop.f32.mrf.mxu0
  %v272 = vadd.f32 %v58, %v271
  %v273 = vpop.f32.mrf.mxu0
  %v274 = vadd.f32 %v62, %v273
  %275 = vmatprep.mubr.bf16.mxu0 0
  %276 = vmatmul.mubr.bf16.gmra.mxu0 %v102
  %v277 = vpop.f32.mrf.mxu0
  %v278 = vadd.f32 %v58, %v277
  %v279 = vpop.f32.mrf.mxu0
  %v280 = vadd.f32 %v62, %v279
  %v281 = vpop.f32.mrf.mxu0
  %v282 = vadd.f32 %v58, %v281
  %v283 = vpop.f32.mrf.mxu0
  %v284 = vadd.f32 %v62, %v283
  %285 = vmatprep.mubr.bf16.mxu0 0
  %286 = vmatmul.mubr.bf16.gmra.mxu0 %v103
  %v287 = vpop.f32.mrf.mxu0
  %v288 = vadd.f32 %v58, %v287
  %v289 = vpop.f32.mrf.mxu0
  %v290 = vadd.f32 %v62, %v289
  %v291 = vpop.f32.mrf.mxu0
  %v292 = vadd.f32 %v58, %v291
  %v293 = vpop.f32.mrf.mxu0
  %v294 = vadd.f32 %v62, %v293
  %295 = vmatprep.mubr.bf16.mxu0 0
  %296 = vmatmul.mubr.bf16.gmra.mxu0 %v104
  %v297 = vpop.f32.mrf.mxu0
  %v298 = vadd.f32 %v58, %v297
  %v299 = vpop.f32.mrf.mxu0
  %v300 = vadd.f32 %v62, %v299
  %v301 = vpop.f32.mrf.mxu0
  %v302 = vadd.f32 %v58, %v301
  %v303 = vpop.f32.mrf.mxu0
  %v304 = vadd.f32 %v62, %v303
  %305 = vdwg.mxu0
  %v306 = vmax.f32 %v228, 0.0
  %v307 = vmax.f32 %v230, 0.0
  %v308 = vmax.f32 %v232, 0.0
  %v309 = vmax.f32 %v234, 0.0
  %v310 = vmax.f32 %v238, 0.0
  %v311 = vmax.f32 %v240, 0.0
  %v312 = vmax.f32 %v242, 0.0
  %v313 = vmax.f32 %v244, 0.0
  %v314 = vmax.f32 %v248, 0.0
  %v315 = vmax.f32 %v250, 0.0
  %v316 = vmax.f32 %v252, 0.0
  %v317 = vmax.f32 %v254, 0.0
  %v318 = vmax.f32 %v258, 0.0
  %v319 = vmax.f32 %v260, 0.0
  %v320 = vmax.f32 %v262, 0.0
  %v321 = vmax.f32 %v264, 0.0
  %v322 = vmax.f32 %v268, 0.0
  %v323 = vmax.f32 %v270, 0.0
  %v324 = vmax.f32 %v272, 0.0
  %v325 = vmax.f32 %v274, 0.0
  %v326 = vmax.f32 %v278, 0.0
  %v327 = vmax.f32 %v280, 0.0
  %v328 = vmax.f32 %v282, 0.0
  %v329 = vmax.f32 %v284, 0.0
  %v330 = vmax.f32 %v288, 0.0
  %v331 = vmax.f32 %v290, 0.0
  %v332 = vmax.f32 %v292, 0.0
  %v333 = vmax.f32 %v294, 0.0
  %v334 = vmax.f32 %v298, 0.0
  %v335 = vmax.f32 %v300, 0.0
  %v336 = vmax.f32 %v302, 0.0
  %v337 = vmax.f32 %v304, 0.0
  %v338 = vpack.c.bf16 %v308, %v306
  %v339 = vpack.c.bf16 %v309, %v307
  %v340 = vpack.c.bf16 %v312, %v310
  %v341 = vpack.c.bf16 %v313, %v311
  %v342 = vpack.c.bf16 %v316, %v314
  %v343 = vpack.c.bf16 %v317, %v315
  %v344 = vpack.c.bf16 %v320, %v318
  %v345 = vpack.c.bf16 %v321, %v319
  %v346 = vpack.c.bf16 %v324, %v322
  %v347 = vpack.c.bf16 %v325, %v323
  %v348 = vpack.c.bf16 %v328, %v326
  %v349 = vpack.c.bf16 %v329, %v327
  %v350 = vpack.c.bf16 %v332, %v330
  %v351 = vpack.c.bf16 %v333, %v331
  %v352 = vpack.c.bf16 %v336, %v334
  %v353 = vpack.c.bf16 %v337, %v335
  %v354 = vld [vmem:[%s3] sm:$0xf]
  %v355 = vld [vmem:[%s3 + $0x4] sm:$0xf]
  %v356 = vld [vmem:[%s3 + $0x8] sm:$0xf]
  %v357 = vld [vmem:[%s3 + $0xc] sm:$0xf]
  %v358 = vld [vmem:[%s3 + $0x10] sm:$0xf]
  %v359 = vld [vmem:[%s3 + $0x14] sm:$0xf]
  %v360 = vld [vmem:[%s3 + $0x18] sm:$0xf]
  %v361 = vld [vmem:[%s3 + $0x1c] sm:$0xf]
  %v362 = vld [vmem:[%s3 + $0x20] sm:$0xf]
  %v363 = vld [vmem:[%s3 + $0x24] sm:$0xf]
  %v364 = vld [vmem:[%s3 + $0x28] sm:$0xf]
  %v365 = vld [vmem:[%s3 + $0x2c] sm:$0xf]
  %v366 = vld [vmem:[%s3 + $0x30] sm:$0xf]
  %v367 = vld [vmem:[%s3 + $0x34] sm:$0xf]
  %v368 = vld [vmem:[%s3 + $0x38] sm:$0xf]
  %v369 = vld [vmem:[%s3 + $0x3c] sm:$0xf]
  %v370 = vld [vmem:[%s3 + $0x40] sm:$0xf]
  %v371 = vld [vmem:[%s3 + $0x44] sm:$0xf]
  %v372 = vld [vmem:[%s3 + $0x48] sm:$0xf]
  %v373 = vld [vmem:[%s3 + $0x4c] sm:$0xf]
  %v374 = vld [vmem:[%s3 + $0x50] sm:$0xf]
  %v375 = vld [vmem:[%s3 + $0x54] sm:$0xf]
  %v376 = vld [vmem:[%s3 + $0x58] sm:$0xf]
  %v377 = vld [vmem:[%s3 + $0x5c] sm:$0xf]
  %v378 = vld [vmem:[%s3 + $0x60] sm:$0xf]
  %v379 = vld [vmem:[%s3 + $0x64] sm:$0xf]
  %v380 = vld [vmem:[%s3 + $0x68] sm:$0xf]
  %v381 = vld [vmem:[%s3 + $0x6c] sm:$0xf]
  %v382 = vld [vmem:[%s3 + $0x70] sm:$0xf]
  %v383 = vld [vmem:[%s3 + $0x74] sm:$0xf]
  %v384 = vld [vmem:[%s3 + $0x78] sm:$0xf]
  %v385 = vld [vmem:[%s3 + $0x7c] sm:$0xf]
  %v386 = vld [vmem:[%s4] sm:$0x1]
  %v388 = vlaneseq
  %v389 = vshrl.u32 %v388, 7
  %v390 = vsub.s32 0, %v389
  %v391 = vrot.slane %v386, %v390
  %v425 = vunpack.c.l.b16 %v354
  %v426 = vunpack.c.l.b16 %v355
  %v427 = vunpack.c.l.b16 %v356
  %v428 = vunpack.c.l.b16 %v357
  %v429 = vunpack.c.l.b16 %v358
  %v430 = vunpack.c.l.b16 %v359
  %v431 = vunpack.c.l.b16 %v360
  %v432 = vunpack.c.l.b16 %v361
  %v433 = vunpack.c.l.b16 %v362
  %v434 = vunpack.c.l.b16 %v363
  %v435 = vunpack.c.l.b16 %v364
  %v436 = vunpack.c.l.b16 %v365
  %v437 = vunpack.c.l.b16 %v366
  %v438 = vunpack.c.l.b16 %v367
  %v439 = vunpack.c.l.b16 %v368
  %v440 = vunpack.c.l.b16 %v369
  %v441 = vunpack.c.l.b16 %v370
  %v442 = vunpack.c.l.b16 %v371
  %v443 = vunpack.c.l.b16 %v372
  %v444 = vunpack.c.l.b16 %v373
  %v445 = vunpack.c.l.b16 %v374
  %v446 = vunpack.c.l.b16 %v375
  %v447 = vunpack.c.l.b16 %v376
  %v448 = vunpack.c.l.b16 %v377
  %v449 = vunpack.c.l.b16 %v378
  %v450 = vunpack.c.l.b16 %v379
  %v451 = vunpack.c.l.b16 %v380
  %v452 = vunpack.c.l.b16 %v381
  %v453 = vunpack.c.l.b16 %v382
  %v454 = vunpack.c.l.b16 %v383
  %v455 = vunpack.c.l.b16 %v384
  %v456 = vunpack.c.l.b16 %v385
  %v457 = vpack.c.b16 %v426, %v425
  %v458 = vpack.c.b16 %v428, %v427
  %v459 = vpack.c.b16 %v430, %v429
  %v460 = vpack.c.b16 %v432, %v431
  %v461 = vpack.c.b16 %v434, %v433
  %v462 = vpack.c.b16 %v436, %v435
  %v463 = vpack.c.b16 %v438, %v437
  %v464 = vpack.c.b16 %v440, %v439
  %v465 = vpack.c.b16 %v442, %v441
  %v466 = vpack.c.b16 %v444, %v443
  %v467 = vpack.c.b16 %v446, %v445
  %v468 = vpack.c.b16 %v448, %v447
  %v469 = vpack.c.b16 %v450, %v449
  %v470 = vpack.c.b16 %v452, %v451
  %v471 = vpack.c.b16 %v454, %v453
  %v472 = vpack.c.b16 %v456, %v455
  %489 = vmatprep.subr.bf16.mxu0 0
  %490 = vmatpush1.bf16.msra.mxu0 %v464
  %491 = vmatprep.subr.bf16.mxu0 0
  %492 = vmatpush1.bf16.msra.mxu0 %v463
  %493 = vmatprep.subr.bf16.mxu0 0
  %494 = vmatpush1.bf16.msra.mxu0 %v462
  %495 = vmatprep.subr.bf16.mxu0 0
  %496 = vmatpush1.bf16.msra.mxu0 %v461
  %497 = vmatprep.subr.bf16.mxu0 0
  %498 = vmatpush1.bf16.msra.mxu0 %v460
  %499 = vmatprep.subr.bf16.mxu0 0
  %500 = vmatpush1.bf16.msra.mxu0 %v459
  %501 = vmatprep.subr.bf16.mxu0 0
  %502 = vmatpush1.bf16.msra.mxu0 %v458
  %503 = vmatprep.subr.bf16.mxu0 0
  %504 = vmatpush1.bf16.msra.mxu0 %v457
  %505 = vmatprep.subr.bf16.mxu0 0
  %506 = vmatpush2.bf16.msra.mxu0 %v472
  %507 = vmatprep.subr.bf16.mxu0 0
  %508 = vmatpush2.bf16.msra.mxu0 %v471
  %509 = vmatprep.subr.bf16.mxu0 0
  %510 = vmatpush2.bf16.msra.mxu0 %v470
  %511 = vmatprep.subr.bf16.mxu0 0
  %512 = vmatpush2.bf16.msra.mxu0 %v469
  %513 = vmatprep.subr.bf16.mxu0 0
  %514 = vmatpush2.bf16.msra.mxu0 %v468
  %515 = vmatprep.subr.bf16.mxu0 0
  %516 = vmatpush2.bf16.msra.mxu0 %v467
  %517 = vmatprep.subr.bf16.mxu0 0
  %518 = vmatpush2.bf16.msra.mxu0 %v466
  %519 = vmatprep.subr.bf16.mxu0 0
  %520 = vmatpush2.bf16.msra.mxu0 %v465
  %521 = vmatprep.mubr.bf16.mxu0 %v339
  %522 = vmatmul.mubr.bf16.gmra.mxu0 %v338
  %v523 = vpop.f32.mrf.mxu0
  %v524 = vadd.f32 %v391, %v523
  %v525 = vpop.f32.mrf.mxu0
  %v526 = vpop.f32.mrf.mxu0
  %v527 = vadd.f32 %v391, %v526
  %v528 = vpop.f32.mrf.mxu0
  %529 = vmatprep.mubr.bf16.mxu0 %v341
  %530 = vmatmul.mubr.bf16.gmra.mxu0 %v340
  %v531 = vpop.f32.mrf.mxu0
  %v532 = vadd.f32 %v391, %v531
  %v533 = vpop.f32.mrf.mxu0
  %v534 = vpop.f32.mrf.mxu0
  %v535 = vadd.f32 %v391, %v534
  %v536 = vpop.f32.mrf.mxu0
  %537 = vmatprep.mubr.bf16.mxu0 %v343
  %538 = vmatmul.mubr.bf16.gmra.mxu0 %v342
  %v539 = vpop.f32.mrf.mxu0
  %v540 = vadd.f32 %v391, %v539
  %v541 = vpop.f32.mrf.mxu0
  %v542 = vpop.f32.mrf.mxu0
  %v543 = vadd.f32 %v391, %v542
  %v544 = vpop.f32.mrf.mxu0
  %545 = vmatprep.mubr.bf16.mxu0 %v345
  %546 = vmatmul.mubr.bf16.gmra.mxu0 %v344
  %v547 = vpop.f32.mrf.mxu0
  %v548 = vadd.f32 %v391, %v547
  %v549 = vpop.f32.mrf.mxu0
  %v550 = vpop.f32.mrf.mxu0
  %v551 = vadd.f32 %v391, %v550
  %v552 = vpop.f32.mrf.mxu0
  %553 = vmatprep.mubr.bf16.mxu0 %v347
  %554 = vmatmul.mubr.bf16.gmra.mxu0 %v346
  %v555 = vpop.f32.mrf.mxu0
  %v556 = vadd.f32 %v391, %v555
  %v557 = vpop.f32.mrf.mxu0
  %v558 = vpop.f32.mrf.mxu0
  %v559 = vadd.f32 %v391, %v558
  %v560 = vpop.f32.mrf.mxu0
  %561 = vmatprep.mubr.bf16.mxu0 %v349
  %562 = vmatmul.mubr.bf16.gmra.mxu0 %v348
  %v563 = vpop.f32.mrf.mxu0
  %v564 = vadd.f32 %v391, %v563
  %v565 = vpop.f32.mrf.mxu0
  %v566 = vpop.f32.mrf.mxu0
  %v567 = vadd.f32 %v391, %v566
  %v568 = vpop.f32.mrf.mxu0
  %569 = vmatprep.mubr.bf16.mxu0 %v351
  %570 = vmatmul.mubr.bf16.gmra.mxu0 %v350
  %v571 = vpop.f32.mrf.mxu0
  %v572 = vadd.f32 %v391, %v571
  %v573 = vpop.f32.mrf.mxu0
  %v574 = vpop.f32.mrf.mxu0
  %v575 = vadd.f32 %v391, %v574
  %v576 = vpop.f32.mrf.mxu0
  %577 = vmatprep.mubr.bf16.mxu0 %v353
  %578 = vmatmul.mubr.bf16.gmra.mxu0 %v352
  %v579 = vpop.f32.mrf.mxu0
  %v580 = vadd.f32 %v391, %v579
  %v581 = vpop.f32.mrf.mxu0
  %v582 = vpop.f32.mrf.mxu0
  %v583 = vadd.f32 %v391, %v582
  %v584 = vpop.f32.mrf.mxu0
  %585 = vdwg.mxu0
  %v586 = vtanh.pop %v524
  %v587 = vtanh.pop %v527
  %v588 = vtanh.pop %v532
  %v589 = vtanh.pop %v535
  %v590 = vtanh.pop %v540
  %v591 = vtanh.pop %v543
  %v592 = vtanh.pop %v548
  %v593 = vtanh.pop %v551
  %v594 = vtanh.pop %v556
  %v595 = vtanh.pop %v559
  %v596 = vtanh.pop %v564
  %v597 = vtanh.pop %v567
  %v598 = vtanh.pop %v572
  %v599 = vtanh.pop %v575
  %v600 = vtanh.pop %v580
  %v601 = vtanh.pop %v583
  %602 = vst [vmem:[%s5] sm:$0xff] %v586
  %603 = vst [vmem:[%s5 + $0x8] sm:$0xff] %v587
  %604 = vst [vmem:[%s5 + $0x10] sm:$0xff] %v588
  %605 = vst [vmem:[%s5 + $0x18] sm:$0xff] %v589
  %606 = vst [vmem:[%s5 + $0x20] sm:$0xff] %v590
  %607 = vst [vmem:[%s5 + $0x28] sm:$0xff] %v591
  %608 = vst [vmem:[%s5 + $0x30] sm:$0xff] %v592
  %609 = vst [vmem:[%s5 + $0x38] sm:$0xff] %v593
  %610 = vst [vmem:[%s5 + $0x40] sm:$0xff] %v594
  %611 = vst [vmem:[%s5 + $0x48] sm:$0xff] %v595
  %612 = vst [vmem:[%s5 + $0x50] sm:$0xff] %v596
  %613 = vst [vmem:[%s5 + $0x58] sm:$0xff] %v597
  %614 = vst [vmem:[%s5 + $0x60] sm:$0xff] %v598
  %615 = vst [vmem:[%s5 + $0x68] sm:$0xff] %v599
  %616 = vst [vmem:[%s5 + $0x70] sm:$0xff] %v600
  %617 = vst [vmem:[%s5 + $0x78] sm:$0xff] %v601
  // Predicated region
  $region22: #{_lambda_.5} parent=0 // pred_check
    _
  $region23: #{_lambda_.5} parent=0 // pred_check_branch
    %619 = sbr.rel (0) target = $region25
  $region24: #{_lambda_.5} parent=0 // pred_region
    _
  $region25: #{_lambda_.5} parent=0 // pred_fallthru
    _
  // Predicated region
  $region26: #{_lambda_.5} parent=0 // pred_check
    _
  $region27: #{_lambda_.5} parent=0 // pred_check_branch
    %621 = sbr.rel (0) target = $region29
  $region28: #{_lambda_.5} parent=0 // pred_region
    _
  $region29: #{_lambda_.5} parent=0 // pred_fallthru
    _

</llo_original>
